<compile_context>
chip_gen: v5e
topology: v5e:2x2
jax: 0.10.0
libtpu: 0.0.40
codegen_flags: <defaults>
</compile_context>

<pallas_src>
import jax
import jax.numpy as jnp
from jax.experimental import pallas as pl
from jax.experimental.pallas import tpu as pltpu

B_PAD = 8        # f32 sublane count: align batch to vreg granularity
FC_LANES = 128   # pad fc output to a lane-dense width


def _round_up(n, m):
    return ((n + m - 1) // m) * m


# --------------------- fused dual-LSTM (+fc) kernel -------------------------
def _make_dual_lstm_kernel(T, Bp, H):
    """Both LSTMs run as one block-diagonal recurrence of width 2H.

    Inputs (all VMEM-resident for the whole call):
      xt (T*Bp, Ep)       text inputs, time-major, batch/feature padded
      xa (T*Bp, Ap)       audio inputs, time-major, batch/feature padded
      wt (Ep, 8H)         text W_ih^T scattered into interleaved gate columns
      wa (Ap, 8H)         audio W_ih^T scattered into interleaved gate columns
      whh (2H, 8H)        block-diagonal recurrent weights
      b  (1, 8H)          combined biases
      pw (2H, FC_LANES)   fc weights (zero rows for the text half, lane padded)
      pb (1, FC_LANES)    fc bias (lane padded)
    Outputs:
      h_out  (T*Bp, 2H)        per-step hidden states [h_text | h_audio]
      fc_out (T*Bp, FC_LANES)  fc(audio hidden states), lane padded
    """
    H2 = 2 * H

    def kernel(xt_ref, xa_ref, wt_ref, wa_ref, whh_ref, b_ref, pw_ref, pb_ref,
               h_out_ref, fc_out_ref):
        # Hoisted input projection for BOTH paths over the whole sequence.
        gx = (jnp.dot(xt_ref[...], wt_ref[...],
                      preferred_element_type=jnp.float32)
              + jnp.dot(xa_ref[...], wa_ref[...],
                        preferred_element_type=jnp.float32)
              + b_ref[...])                                   # (T*Bp, 8H)

        whh = whh_ref[...]                                    # (2H, 8H)
        h = jnp.zeros((Bp, H2), jnp.float32)
        c = jnp.zeros((Bp, H2), jnp.float32)

        # Statically unrolled recurrence; one MXU push per step covers both LSTMs.
        for t in range(T):
            gates = gx[t * Bp:(t + 1) * Bp, :] + jnp.dot(
                h, whh, preferred_element_type=jnp.float32)   # (Bp, 8H)
            s = jax.nn.sigmoid(gates)                         # full-vreg EUP pass
            u = jnp.tanh(gates)                               # full-vreg EUP pass
            i = s[:, 0 * H2:1 * H2]
            f = s[:, 1 * H2:2 * H2]
            g = u[:, 2 * H2:3 * H2]
            o = s[:, 3 * H2:4 * H2]
            c = f * c + i * g
            h = o * jnp.tanh(c)
            h_out_ref[t * Bp:(t + 1) * Bp, :] = h             # aligned 8-row store

        # fc epilogue on the VMEM-resident hidden states (text rows of pw are 0,
        # so it picks out the audio half); 128 lanes => lane-dense final store.
        fc_out_ref[...] = (jnp.dot(h_out_ref[...], pw_ref[...],
                                   preferred_element_type=jnp.float32)
                           + pb_ref[...])

    return kernel


# ---------------------- one-time parameter preprocessing --------------------
def _scatter_gate_cols(w, path, H):
    """(rows, 4H) [i,f,g,o] -> (rows, 8H) interleaved [i_t,i_a,f_t,f_a,...];
    path 0 = text columns, 1 = audio columns (other path's columns are zero)."""
    w4 = w.reshape(-1, 4, 1, H)
    z = jnp.zeros_like(w4)
    parts = (w4, z) if path == 0 else (z, w4)
    return jnp.concatenate(parts, axis=2).reshape(-1, 8 * H)


def preprocess_params(params):
    """Repack PyTorch-layout params into the fused-kernel layout (done once)."""
    f32 = jnp.float32
    H = params["text_w_hh"].shape[1]
    E = params["text_w_ih"].shape[1]
    A = params["audio_w_ih"].shape[1]
    n_out = params["fc_w"].shape[0]
    E_pad, A_pad = _round_up(E, 8), _round_up(A, 8)

    wt = _scatter_gate_cols(params["text_w_ih"].T.astype(f32), 0, H)
    wa = _scatter_gate_cols(params["audio_w_ih"].T.astype(f32), 1, H)
    wt = jnp.pad(wt, ((0, E_pad - E), (0, 0)))                      # (Ep, 8H)
    wa = jnp.pad(wa, ((0, A_pad - A), (0, 0)))                      # (Ap, 8H)

    whh = jnp.concatenate(
        [_scatter_gate_cols(params["text_w_hh"].T.astype(f32), 0, H),
         _scatter_gate_cols(params["audio_w_hh"].T.astype(f32), 1, H)],
        axis=0)                                                     # (2H, 8H)

    b = (_scatter_gate_cols((params["text_b_ih"] + params["text_b_hh"])
                            .reshape(1, 4 * H).astype(f32), 0, H)
         + _scatter_gate_cols((params["audio_b_ih"] + params["audio_b_hh"])
                              .reshape(1, 4 * H).astype(f32), 1, H))  # (1, 8H)

    pw = jnp.zeros((2 * H, FC_LANES), f32).at[H:, :n_out].set(
        params["fc_w"].T.astype(f32))
    pb = jnp.zeros((1, FC_LANES), f32).at[0, :n_out].set(
        params["fc_b"].astype(f32))

    return {"embedding": params["embedding"].astype(f32),
            "wt": wt, "wa": wa, "whh": whh, "b": b, "pw": pw, "pb": pb}


# ------------------------------ forward --------------------------------------
def _to_time_major_padded(x_bm, T, Bp, Fp):
    """(B, Tb, F) -> (T*Bp, Fp) f32: time-major, time/batch/feature zero-padded."""
    Bsz, Tb, F = x_bm.shape
    x_tm = jnp.transpose(x_bm, (1, 0, 2)).astype(jnp.float32)
    if (Tb, Bsz, F) != (T, Bp, Fp):
        x_tm = jnp.pad(x_tm, ((0, T - Tb), (0, Bp - Bsz), (0, Fp - F)))
    return x_tm.reshape(T * Bp, Fp)


@jax.jit
def music_rnn_forward(pp, text, audio):
    """pp: preprocess_params(...) output. text: (B, Tt) int32; audio: (B, Ta, 13).
    Returns (out (B, Ta, 13), text_out_tm (Tt, B, H)); `out` matches the PyTorch
    module's return value, text_out is the module-internal text LSTM output."""
    H = pp["whh"].shape[0] // 2
    n_out = audio.shape[-1]
    Bsz, Tt = text.shape
    Ta = audio.shape[1]
    T = max(Tt, Ta)
    Bp = _round_up(max(Bsz, 1), B_PAD)

    emb = jnp.take(pp["embedding"], text, axis=0)            # (B, Tt, E) gather
    xt = _to_time_major_padded(emb, T, Bp, pp["wt"].shape[0])
    xa = _to_time_major_padded(audio, T, Bp, pp["wa"].shape[0])

    vmem = pl.BlockSpec(memory_space=pltpu.MemorySpace.VMEM)
    h_out, fc_out = pl.pallas_call(
        _make_dual_lstm_kernel(T, Bp, H),
        out_shape=(jax.ShapeDtypeStruct((T * Bp, 2 * H), jnp.float32),
                   jax.ShapeDtypeStruct((T * Bp, FC_LANES), jnp.float32)),
        in_specs=[vmem] * 8,
        out_specs=(vmem, vmem),
    )(xt, xa, pp["wt"], pp["wa"], pp["whh"], pp["b"], pp["pw"], pp["pb"])

    h3 = h_out.reshape(T, Bp, 2 * H)
    text_out_tm = h3[:Tt, :Bsz, :H]                          # (Tt, B, H)
    fc3 = fc_out.reshape(T, Bp, FC_LANES)
    out = jnp.transpose(fc3[:Ta, :Bsz, :n_out], (1, 0, 2))   # (B, Ta, 13)
    return out, text_out_tm


# ------------------------------ reference -----------------------------------
def _lstm_ref(x_tm, w_ih, w_hh, b_ih, b_hh):
    T, B, _ = x_tm.shape
    H = w_hh.shape[1]                      # w_hh is (4H, H)

    def step(carry, x):
        h, c = carry
        gates = x @ w_ih.T + h @ w_hh.T + b_ih + b_hh
        i, f, g, o = jnp.split(gates, 4, axis=-1)
        i, f, o = jax.nn.sigmoid(i), jax.nn.sigmoid(f), jax.nn.sigmoid(o)
        g = jnp.tanh(g)
        c = f * c + i * g
        h = o * jnp.tanh(c)
        return (h, c), h

    init = (jnp.zeros((B, H), jnp.float32), jnp.zeros((B, H), jnp.float32))
    _, ys = jax.lax.scan(step, init, x_tm)
    return ys


def music_rnn_ref(params, text, audio):
    audio_tm = jnp.transpose(audio, (1, 0, 2))
    audio_out_tm = _lstm_ref(audio_tm,
                             params["audio_w_ih"], params["audio_w_hh"],
                             params["audio_b_ih"], params["audio_b_hh"])
    out_tm = audio_out_tm @ params["fc_w"].T + params["fc_b"]
    return jnp.transpose(out_tm, (1, 0, 2))


# --------------------------------- main --------------------------------------
if __name__ == "__main__":
    vocab_size, embedding_dim, hidden_dim = 32, 16, 32
    B, T_text, T_audio, n_mfcc = 2, 8, 8, 13

    key = jax.random.PRNGKey(0)
    ks = jax.random.split(key, 12)
    scale = 0.1

    def u(k, shape):
        return jax.random.uniform(k, shape, jnp.float32, -scale, scale)

    params = {
        "embedding":  u(ks[0], (vocab_size, embedding_dim)),
        # PyTorch LSTM param shapes: w_ih (4H, in), w_hh (4H, H), biases (4H,)
        "text_w_ih":  u(ks[1], (4 * hidden_dim, embedding_dim)),
        "text_w_hh":  u(ks[2], (4 * hidden_dim, hidden_dim)),
        "text_b_ih":  u(ks[3], (4 * hidden_dim,)),
        "text_b_hh":  u(ks[4], (4 * hidden_dim,)),
        "audio_w_ih": u(ks[5], (4 * hidden_dim, n_mfcc)),
        "audio_w_hh": u(ks[6], (4 * hidden_dim, hidden_dim)),
        "audio_b_ih": u(ks[7], (4 * hidden_dim,)),
        "audio_b_hh": u(ks[8], (4 * hidden_dim,)),
        "fc_w":       u(ks[9], (n_mfcc, hidden_dim)),
        "fc_b":       u(ks[10], (n_mfcc,)),
    }

    text = jax.random.randint(ks[11], (B, T_text), 0, vocab_size, jnp.int32)
    audio = jax.random.normal(jax.random.fold_in(key, 99),
                              (B, T_audio, n_mfcc), jnp.float32)

    # One-time repack of parameters into the fused-kernel layout.
    pp = jax.tree_util.tree_map(jax.block_until_ready, preprocess_params(params))

    out, text_out_tm = music_rnn_forward(pp, text, audio)
    out = jax.block_until_ready(out)
    text_out_tm = jax.block_until_ready(text_out_tm)

    # Validate the audio->fc path (the module's return value) against pure JAX.
    ref = jax.block_until_ready(music_rnn_ref(params, text, audio))
    assert out.shape == (B, T_audio, n_mfcc), out.shape
    assert jnp.allclose(out, ref, atol=1e-4, rtol=1e-4), float(
        jnp.max(jnp.abs(out - ref)))

    # Also sanity-check the (discarded by the module) text LSTM output.
    text_ref = jax.block_until_ready(_lstm_ref(
        jnp.transpose(jnp.take(params["embedding"], text, axis=0), (1, 0, 2)),
        params["text_w_ih"], params["text_w_hh"],
        params["text_b_ih"], params["text_b_hh"]))
    assert jnp.allclose(text_out_tm, text_ref, atol=1e-4, rtol=1e-4), float(
        jnp.max(jnp.abs(text_out_tm - text_ref)))

    print("KERNEL_OK")
</pallas_src>

<mosaic_0001>
module attributes {stable_mosaic.version = 11 : i64} {
  func.func @kernel(%arg0: memref<64x16xf32, #tpu.memory_space<vmem>>, %arg1: memref<64x16xf32, #tpu.memory_space<vmem>>, %arg2: memref<16x256xf32, #tpu.memory_space<vmem>>, %arg3: memref<16x256xf32, #tpu.memory_space<vmem>>, %arg4: memref<64x256xf32, #tpu.memory_space<vmem>>, %arg5: memref<1x256xf32, #tpu.memory_space<vmem>>, %arg6: memref<64x128xf32, #tpu.memory_space<vmem>>, %arg7: memref<1x128xf32, #tpu.memory_space<vmem>>, %arg8: memref<64x64xf32, #tpu.memory_space<vmem>>, %arg9: memref<64x128xf32, #tpu.memory_space<vmem>>) attributes {dimension_semantics = [], scalar_prefetch = 0 : i64, scratch_operands = 0 : i64, tpu.core_type = #tpu.core_type<tc>} {
    %c0 = arith.constant 0 : index
    %c0_0 = arith.constant 0 : index
    %0 = vector.load %arg0[%c0, %c0_0] : memref<64x16xf32, #tpu.memory_space<vmem>>, vector<64x16xf32>
    %c0_1 = arith.constant 0 : index
    %c0_2 = arith.constant 0 : index
    %1 = vector.load %arg2[%c0_1, %c0_2] : memref<16x256xf32, #tpu.memory_space<vmem>>, vector<16x256xf32>
    %cst = arith.constant dense<0.000000e+00> : vector<64x256xf32>
    %2 = tpu.matmul %0, %1, %cst {dimension_numbers = #tpu.dot_dimension_numbers<[1], [0], [0], [1], [0, 0, 1, 1], [], []>} : vector<64x16xf32>, vector<16x256xf32>, vector<64x256xf32> -> vector<64x256xf32>
    %c0_3 = arith.constant 0 : index
    %c0_4 = arith.constant 0 : index
    %3 = vector.load %arg1[%c0_3, %c0_4] : memref<64x16xf32, #tpu.memory_space<vmem>>, vector<64x16xf32>
    %c0_5 = arith.constant 0 : index
    %c0_6 = arith.constant 0 : index
    %4 = vector.load %arg3[%c0_5, %c0_6] : memref<16x256xf32, #tpu.memory_space<vmem>>, vector<16x256xf32>
    %cst_7 = arith.constant dense<0.000000e+00> : vector<64x256xf32>
    %5 = tpu.matmul %3, %4, %cst_7 {dimension_numbers = #tpu.dot_dimension_numbers<[1], [0], [0], [1], [0, 0, 1, 1], [], []>} : vector<64x16xf32>, vector<16x256xf32>, vector<64x256xf32> -> vector<64x256xf32>
    %6 = arith.addf %2, %5 : vector<64x256xf32>
    %c0_8 = arith.constant 0 : index
    %c0_9 = arith.constant 0 : index
    %7 = vector.load %arg5[%c0_8, %c0_9] : memref<1x256xf32, #tpu.memory_space<vmem>>, vector<1x256xf32>
    %8 = vector.broadcast %7 : vector<1x256xf32> to vector<64x256xf32>
    %9 = arith.addf %6, %8 : vector<64x256xf32>
    %c0_10 = arith.constant 0 : index
    %c0_11 = arith.constant 0 : index
    %10 = vector.load %arg4[%c0_10, %c0_11] : memref<64x256xf32, #tpu.memory_space<vmem>>, vector<64x256xf32>
    %cst_12 = arith.constant 0.000000e+00 : f32
    %11 = vector.broadcast %cst_12 : f32 to vector<8x64xf32>
    %cst_13 = arith.constant 0.000000e+00 : f32
    %12 = vector.broadcast %cst_13 : f32 to vector<8x64xf32>
    %13 = vector.extract_strided_slice %9 {offsets = [0, 0], sizes = [8, 256], strides = [1, 1]} : vector<64x256xf32> to vector<8x256xf32>
    %cst_14 = arith.constant dense<0.000000e+00> : vector<8x256xf32>
    %14 = tpu.matmul %11, %10, %cst_14 {dimension_numbers = #tpu.dot_dimension_numbers<[1], [0], [0], [1], [0, 0, 1, 1], [], []>} : vector<8x64xf32>, vector<64x256xf32>, vector<8x256xf32> -> vector<8x256xf32>
    %15 = arith.addf %13, %14 : vector<8x256xf32>
    %16 = arith.negf %15 : vector<8x256xf32>
    %17 = math.exp %16 : vector<8x256xf32>
    %cst_15 = arith.constant 1.000000e+00 : f32
    %18 = vector.broadcast %cst_15 : f32 to vector<8x256xf32>
    %19 = arith.addf %18, %17 : vector<8x256xf32>
    %20 = arith.divf %18, %19 : vector<8x256xf32>
    %21 = math.tanh %15 : vector<8x256xf32>
    %22 = vector.extract_strided_slice %20 {offsets = [0, 0], sizes = [8, 64], strides = [1, 1]} : vector<8x256xf32> to vector<8x64xf32>
    %23 = vector.extract_strided_slice %20 {offsets = [0, 64], sizes = [8, 64], strides = [1, 1]} : vector<8x256xf32> to vector<8x64xf32>
    %24 = vector.extract_strided_slice %21 {offsets = [0, 128], sizes = [8, 64], strides = [1, 1]} : vector<8x256xf32> to vector<8x64xf32>
    %25 = vector.extract_strided_slice %20 {offsets = [0, 192], sizes = [8, 64], strides = [1, 1]} : vector<8x256xf32> to vector<8x64xf32>
    %26 = arith.mulf %23, %12 : vector<8x64xf32>
    %27 = arith.mulf %22, %24 : vector<8x64xf32>
    %28 = arith.addf %26, %27 : vector<8x64xf32>
    %29 = math.tanh %28 : vector<8x64xf32>
    %30 = arith.mulf %25, %29 : vector<8x64xf32>
    %c0_16 = arith.constant 0 : index
    %c0_17 = arith.constant 0 : index
    %31 = vector.load %arg8[%c0_16, %c0_17] : memref<64x64xf32, #tpu.memory_space<vmem>>, vector<8x64xf32>
    tpu.vector_store %arg8[%c0_16, %c0_17], %30 {strides = array<i32>} : memref<64x64xf32, #tpu.memory_space<vmem>>, vector<8x64xf32>,
    %32 = vector.extract_strided_slice %9 {offsets = [8, 0], sizes = [8, 256], strides = [1, 1]} : vector<64x256xf32> to vector<8x256xf32>
    %cst_18 = arith.constant dense<0.000000e+00> : vector<8x256xf32>
    %33 = tpu.matmul %30, %10, %cst_18 {dimension_numbers = #tpu.dot_dimension_numbers<[1], [0], [0], [1], [0, 0, 1, 1], [], []>} : vector<8x64xf32>, vector<64x256xf32>, vector<8x256xf32> -> vector<8x256xf32>
    %34 = arith.addf %32, %33 : vector<8x256xf32>
    %35 = arith.negf %34 : vector<8x256xf32>
    %36 = math.exp %35 : vector<8x256xf32>
    %cst_19 = arith.constant 1.000000e+00 : f32
    %37 = vector.broadcast %cst_19 : f32 to vector<8x256xf32>
    %38 = arith.addf %37, %36 : vector<8x256xf32>
    %39 = arith.divf %37, %38 : vector<8x256xf32>
    %40 = math.tanh %34 : vector<8x256xf32>
    %41 = vector.extract_strided_slice %39 {offsets = [0, 0], sizes = [8, 64], strides = [1, 1]} : vector<8x256xf32> to vector<8x64xf32>
    %42 = vector.extract_strided_slice %39 {offsets = [0, 64], sizes = [8, 64], strides = [1, 1]} : vector<8x256xf32> to vector<8x64xf32>
    %43 = vector.extract_strided_slice %40 {offsets = [0, 128], sizes = [8, 64], strides = [1, 1]} : vector<8x256xf32> to vector<8x64xf32>
    %44 = vector.extract_strided_slice %39 {offsets = [0, 192], sizes = [8, 64], strides = [1, 1]} : vector<8x256xf32> to vector<8x64xf32>
    %45 = arith.mulf %42, %28 : vector<8x64xf32>
    %46 = arith.mulf %41, %43 : vector<8x64xf32>
    %47 = arith.addf %45, %46 : vector<8x64xf32>
    %48 = math.tanh %47 : vector<8x64xf32>
    %49 = arith.mulf %44, %48 : vector<8x64xf32>
    %c8 = arith.constant 8 : index
    %c0_20 = arith.constant 0 : index
    %50 = vector.load %arg8[%c8, %c0_20] : memref<64x64xf32, #tpu.memory_space<vmem>>, vector<8x64xf32>
    tpu.vector_store %arg8[%c8, %c0_20], %49 {strides = array<i32>} : memref<64x64xf32, #tpu.memory_space<vmem>>, vector<8x64xf32>,
    %51 = vector.extract_strided_slice %9 {offsets = [16, 0], sizes = [8, 256], strides = [1, 1]} : vector<64x256xf32> to vector<8x256xf32>
    %cst_21 = arith.constant dense<0.000000e+00> : vector<8x256xf32>
    %52 = tpu.matmul %49, %10, %cst_21 {dimension_numbers = #tpu.dot_dimension_numbers<[1], [0], [0], [1], [0, 0, 1, 1], [], []>} : vector<8x64xf32>, vector<64x256xf32>, vector<8x256xf32> -> vector<8x256xf32>
    %53 = arith.addf %51, %52 : vector<8x256xf32>
    %54 = arith.negf %53 : vector<8x256xf32>
    %55 = math.exp %54 : vector<8x256xf32>
    %cst_22 = arith.constant 1.000000e+00 : f32
    %56 = vector.broadcast %cst_22 : f32 to vector<8x256xf32>
    %57 = arith.addf %56, %55 : vector<8x256xf32>
    %58 = arith.divf %56, %57 : vector<8x256xf32>
    %59 = math.tanh %53 : vector<8x256xf32>
    %60 = vector.extract_strided_slice %58 {offsets = [0, 0], sizes = [8, 64], strides = [1, 1]} : vector<8x256xf32> to vector<8x64xf32>
    %61 = vector.extract_strided_slice %58 {offsets = [0, 64], sizes = [8, 64], strides = [1, 1]} : vector<8x256xf32> to vector<8x64xf32>
    %62 = vector.extract_strided_slice %59 {offsets = [0, 128], sizes = [8, 64], strides = [1, 1]} : vector<8x256xf32> to vector<8x64xf32>
    %63 = vector.extract_strided_slice %58 {offsets = [0, 192], sizes = [8, 64], strides = [1, 1]} : vector<8x256xf32> to vector<8x64xf32>
    %64 = arith.mulf %61, %47 : vector<8x64xf32>
    %65 = arith.mulf %60, %62 : vector<8x64xf32>
    %66 = arith.addf %64, %65 : vector<8x64xf32>
    %67 = math.tanh %66 : vector<8x64xf32>
    %68 = arith.mulf %63, %67 : vector<8x64xf32>
    %c16 = arith.constant 16 : index
    %c0_23 = arith.constant 0 : index
    %69 = vector.load %arg8[%c16, %c0_23] : memref<64x64xf32, #tpu.memory_space<vmem>>, vector<8x64xf32>
    tpu.vector_store %arg8[%c16, %c0_23], %68 {strides = array<i32>} : memref<64x64xf32, #tpu.memory_space<vmem>>, vector<8x64xf32>,
    %70 = vector.extract_strided_slice %9 {offsets = [24, 0], sizes = [8, 256], strides = [1, 1]} : vector<64x256xf32> to vector<8x256xf32>
    %cst_24 = arith.constant dense<0.000000e+00> : vector<8x256xf32>
    %71 = tpu.matmul %68, %10, %cst_24 {dimension_numbers = #tpu.dot_dimension_numbers<[1], [0], [0], [1], [0, 0, 1, 1], [], []>} : vector<8x64xf32>, vector<64x256xf32>, vector<8x256xf32> -> vector<8x256xf32>
    %72 = arith.addf %70, %71 : vector<8x256xf32>
    %73 = arith.negf %72 : vector<8x256xf32>
    %74 = math.exp %73 : vector<8x256xf32>
    %cst_25 = arith.constant 1.000000e+00 : f32
    %75 = vector.broadcast %cst_25 : f32 to vector<8x256xf32>
    %76 = arith.addf %75, %74 : vector<8x256xf32>
    %77 = arith.divf %75, %76 : vector<8x256xf32>
    %78 = math.tanh %72 : vector<8x256xf32>
    %79 = vector.extract_strided_slice %77 {offsets = [0, 0], sizes = [8, 64], strides = [1, 1]} : vector<8x256xf32> to vector<8x64xf32>
    %80 = vector.extract_strided_slice %77 {offsets = [0, 64], sizes = [8, 64], strides = [1, 1]} : vector<8x256xf32> to vector<8x64xf32>
    %81 = vector.extract_strided_slice %78 {offsets = [0, 128], sizes = [8, 64], strides = [1, 1]} : vector<8x256xf32> to vector<8x64xf32>
    %82 = vector.extract_strided_slice %77 {offsets = [0, 192], sizes = [8, 64], strides = [1, 1]} : vector<8x256xf32> to vector<8x64xf32>
    %83 = arith.mulf %80, %66 : vector<8x64xf32>
    %84 = arith.mulf %79, %81 : vector<8x64xf32>
    %85 = arith.addf %83, %84 : vector<8x64xf32>
    %86 = math.tanh %85 : vector<8x64xf32>
    %87 = arith.mulf %82, %86 : vector<8x64xf32>
    %c24 = arith.constant 24 : index
    %c0_26 = arith.constant 0 : index
    %88 = vector.load %arg8[%c24, %c0_26] : memref<64x64xf32, #tpu.memory_space<vmem>>, vector<8x64xf32>
    tpu.vector_store %arg8[%c24, %c0_26], %87 {strides = array<i32>} : memref<64x64xf32, #tpu.memory_space<vmem>>, vector<8x64xf32>,
    %89 = vector.extract_strided_slice %9 {offsets = [32, 0], sizes = [8, 256], strides = [1, 1]} : vector<64x256xf32> to vector<8x256xf32>
    %cst_27 = arith.constant dense<0.000000e+00> : vector<8x256xf32>
    %90 = tpu.matmul %87, %10, %cst_27 {dimension_numbers = #tpu.dot_dimension_numbers<[1], [0], [0], [1], [0, 0, 1, 1], [], []>} : vector<8x64xf32>, vector<64x256xf32>, vector<8x256xf32> -> vector<8x256xf32>
    %91 = arith.addf %89, %90 : vector<8x256xf32>
    %92 = arith.negf %91 : vector<8x256xf32>
    %93 = math.exp %92 : vector<8x256xf32>
    %cst_28 = arith.constant 1.000000e+00 : f32
    %94 = vector.broadcast %cst_28 : f32 to vector<8x256xf32>
    %95 = arith.addf %94, %93 : vector<8x256xf32>
    %96 = arith.divf %94, %95 : vector<8x256xf32>
    %97 = math.tanh %91 : vector<8x256xf32>
    %98 = vector.extract_strided_slice %96 {offsets = [0, 0], sizes = [8, 64], strides = [1, 1]} : vector<8x256xf32> to vector<8x64xf32>
    %99 = vector.extract_strided_slice %96 {offsets = [0, 64], sizes = [8, 64], strides = [1, 1]} : vector<8x256xf32> to vector<8x64xf32>
    %100 = vector.extract_strided_slice %97 {offsets = [0, 128], sizes = [8, 64], strides = [1, 1]} : vector<8x256xf32> to vector<8x64xf32>
    %101 = vector.extract_strided_slice %96 {offsets = [0, 192], sizes = [8, 64], strides = [1, 1]} : vector<8x256xf32> to vector<8x64xf32>
    %102 = arith.mulf %99, %85 : vector<8x64xf32>
    %103 = arith.mulf %98, %100 : vector<8x64xf32>
    %104 = arith.addf %102, %103 : vector<8x64xf32>
    %105 = math.tanh %104 : vector<8x64xf32>
    %106 = arith.mulf %101, %105 : vector<8x64xf32>
    %c32 = arith.constant 32 : index
    %c0_29 = arith.constant 0 : index
    %107 = vector.load %arg8[%c32, %c0_29] : memref<64x64xf32, #tpu.memory_space<vmem>>, vector<8x64xf32>
    tpu.vector_store %arg8[%c32, %c0_29], %106 {strides = array<i32>} : memref<64x64xf32, #tpu.memory_space<vmem>>, vector<8x64xf32>,
    %108 = vector.extract_strided_slice %9 {offsets = [40, 0], sizes = [8, 256], strides = [1, 1]} : vector<64x256xf32> to vector<8x256xf32>
    %cst_30 = arith.constant dense<0.000000e+00> : vector<8x256xf32>
    %109 = tpu.matmul %106, %10, %cst_30 {dimension_numbers = #tpu.dot_dimension_numbers<[1], [0], [0], [1], [0, 0, 1, 1], [], []>} : vector<8x64xf32>, vector<64x256xf32>, vector<8x256xf32> -> vector<8x256xf32>
    %110 = arith.addf %108, %109 : vector<8x256xf32>
    %111 = arith.negf %110 : vector<8x256xf32>
    %112 = math.exp %111 : vector<8x256xf32>
    %cst_31 = arith.constant 1.000000e+00 : f32
    %113 = vector.broadcast %cst_31 : f32 to vector<8x256xf32>
    %114 = arith.addf %113, %112 : vector<8x256xf32>
    %115 = arith.divf %113, %114 : vector<8x256xf32>
    %116 = math.tanh %110 : vector<8x256xf32>
    %117 = vector.extract_strided_slice %115 {offsets = [0, 0], sizes = [8, 64], strides = [1, 1]} : vector<8x256xf32> to vector<8x64xf32>
    %118 = vector.extract_strided_slice %115 {offsets = [0, 64], sizes = [8, 64], strides = [1, 1]} : vector<8x256xf32> to vector<8x64xf32>
    %119 = vector.extract_strided_slice %116 {offsets = [0, 128], sizes = [8, 64], strides = [1, 1]} : vector<8x256xf32> to vector<8x64xf32>
    %120 = vector.extract_strided_slice %115 {offsets = [0, 192], sizes = [8, 64], strides = [1, 1]} : vector<8x256xf32> to vector<8x64xf32>
    %121 = arith.mulf %118, %104 : vector<8x64xf32>
    %122 = arith.mulf %117, %119 : vector<8x64xf32>
    %123 = arith.addf %121, %122 : vector<8x64xf32>
    %124 = math.tanh %123 : vector<8x64xf32>
    %125 = arith.mulf %120, %124 : vector<8x64xf32>
    %c40 = arith.constant 40 : index
    %c0_32 = arith.constant 0 : index
    %126 = vector.load %arg8[%c40, %c0_32] : memref<64x64xf32, #tpu.memory_space<vmem>>, vector<8x64xf32>
    tpu.vector_store %arg8[%c40, %c0_32], %125 {strides = array<i32>} : memref<64x64xf32, #tpu.memory_space<vmem>>, vector<8x64xf32>,
    %127 = vector.extract_strided_slice %9 {offsets = [48, 0], sizes = [8, 256], strides = [1, 1]} : vector<64x256xf32> to vector<8x256xf32>
    %cst_33 = arith.constant dense<0.000000e+00> : vector<8x256xf32>
    %128 = tpu.matmul %125, %10, %cst_33 {dimension_numbers = #tpu.dot_dimension_numbers<[1], [0], [0], [1], [0, 0, 1, 1], [], []>} : vector<8x64xf32>, vector<64x256xf32>, vector<8x256xf32> -> vector<8x256xf32>
    %129 = arith.addf %127, %128 : vector<8x256xf32>
    %130 = arith.negf %129 : vector<8x256xf32>
    %131 = math.exp %130 : vector<8x256xf32>
    %cst_34 = arith.constant 1.000000e+00 : f32
    %132 = vector.broadcast %cst_34 : f32 to vector<8x256xf32>
    %133 = arith.addf %132, %131 : vector<8x256xf32>
    %134 = arith.divf %132, %133 : vector<8x256xf32>
    %135 = math.tanh %129 : vector<8x256xf32>
    %136 = vector.extract_strided_slice %134 {offsets = [0, 0], sizes = [8, 64], strides = [1, 1]} : vector<8x256xf32> to vector<8x64xf32>
    %137 = vector.extract_strided_slice %134 {offsets = [0, 64], sizes = [8, 64], strides = [1, 1]} : vector<8x256xf32> to vector<8x64xf32>
    %138 = vector.extract_strided_slice %135 {offsets = [0, 128], sizes = [8, 64], strides = [1, 1]} : vector<8x256xf32> to vector<8x64xf32>
    %139 = vector.extract_strided_slice %134 {offsets = [0, 192], sizes = [8, 64], strides = [1, 1]} : vector<8x256xf32> to vector<8x64xf32>
    %140 = arith.mulf %137, %123 : vector<8x64xf32>
    %141 = arith.mulf %136, %138 : vector<8x64xf32>
    %142 = arith.addf %140, %141 : vector<8x64xf32>
    %143 = math.tanh %142 : vector<8x64xf32>
    %144 = arith.mulf %139, %143 : vector<8x64xf32>
    %c48 = arith.constant 48 : index
    %c0_35 = arith.constant 0 : index
    %145 = vector.load %arg8[%c48, %c0_35] : memref<64x64xf32, #tpu.memory_space<vmem>>, vector<8x64xf32>
    tpu.vector_store %arg8[%c48, %c0_35], %144 {strides = array<i32>} : memref<64x64xf32, #tpu.memory_space<vmem>>, vector<8x64xf32>,
    %146 = vector.extract_strided_slice %9 {offsets = [56, 0], sizes = [8, 256], strides = [1, 1]} : vector<64x256xf32> to vector<8x256xf32>
    %cst_36 = arith.constant dense<0.000000e+00> : vector<8x256xf32>
    %147 = tpu.matmul %144, %10, %cst_36 {dimension_numbers = #tpu.dot_dimension_numbers<[1], [0], [0], [1], [0, 0, 1, 1], [], []>} : vector<8x64xf32>, vector<64x256xf32>, vector<8x256xf32> -> vector<8x256xf32>
    %148 = arith.addf %146, %147 : vector<8x256xf32>
    %149 = arith.negf %148 : vector<8x256xf32>
    %150 = math.exp %149 : vector<8x256xf32>
    %cst_37 = arith.constant 1.000000e+00 : f32
    %151 = vector.broadcast %cst_37 : f32 to vector<8x256xf32>
    %152 = arith.addf %151, %150 : vector<8x256xf32>
    %153 = arith.divf %151, %152 : vector<8x256xf32>
    %154 = math.tanh %148 : vector<8x256xf32>
    %155 = vector.extract_strided_slice %153 {offsets = [0, 0], sizes = [8, 64], strides = [1, 1]} : vector<8x256xf32> to vector<8x64xf32>
    %156 = vector.extract_strided_slice %153 {offsets = [0, 64], sizes = [8, 64], strides = [1, 1]} : vector<8x256xf32> to vector<8x64xf32>
    %157 = vector.extract_strided_slice %154 {offsets = [0, 128], sizes = [8, 64], strides = [1, 1]} : vector<8x256xf32> to vector<8x64xf32>
    %158 = vector.extract_strided_slice %153 {offsets = [0, 192], sizes = [8, 64], strides = [1, 1]} : vector<8x256xf32> to vector<8x64xf32>
    %159 = arith.mulf %156, %142 : vector<8x64xf32>
    %160 = arith.mulf %155, %157 : vector<8x64xf32>
    %161 = arith.addf %159, %160 : vector<8x64xf32>
    %162 = math.tanh %161 : vector<8x64xf32>
    %163 = arith.mulf %158, %162 : vector<8x64xf32>
    %c56 = arith.constant 56 : index
    %c0_38 = arith.constant 0 : index
    %164 = vector.load %arg8[%c56, %c0_38] : memref<64x64xf32, #tpu.memory_space<vmem>>, vector<8x64xf32>
    tpu.vector_store %arg8[%c56, %c0_38], %163 {strides = array<i32>} : memref<64x64xf32, #tpu.memory_space<vmem>>, vector<8x64xf32>,
    %c0_39 = arith.constant 0 : index
    %c0_40 = arith.constant 0 : index
    %165 = vector.load %arg8[%c0_39, %c0_40] : memref<64x64xf32, #tpu.memory_space<vmem>>, vector<64x64xf32>
    %c0_41 = arith.constant 0 : index
    %c0_42 = arith.constant 0 : index
    %166 = vector.load %arg6[%c0_41, %c0_42] : memref<64x128xf32, #tpu.memory_space<vmem>>, vector<64x128xf32>
    %cst_43 = arith.constant dense<0.000000e+00> : vector<64x128xf32>
    %167 = tpu.matmul %165, %166, %cst_43 {dimension_numbers = #tpu.dot_dimension_numbers<[1], [0], [0], [1], [0, 0, 1, 1], [], []>} : vector<64x64xf32>, vector<64x128xf32>, vector<64x128xf32> -> vector<64x128xf32>
    %c0_44 = arith.constant 0 : index
    %c0_45 = arith.constant 0 : index
    %168 = vector.load %arg7[%c0_44, %c0_45] : memref<1x128xf32, #tpu.memory_space<vmem>>, vector<1x128xf32>
    %169 = vector.broadcast %168 : vector<1x128xf32> to vector<64x128xf32>
    %170 = arith.addf %167, %169 : vector<64x128xf32>
    %c0_46 = arith.constant 0 : index
    %c0_47 = arith.constant 0 : index
    %171 = vector.load %arg9[%c0_46, %c0_47] : memref<64x128xf32, #tpu.memory_space<vmem>>, vector<64x128xf32>
    tpu.vector_store %arg9[%c0_46, %c0_47], %170 {strides = array<i32>} : memref<64x128xf32, #tpu.memory_space<vmem>>, vector<64x128xf32>,
    return
  }
}

</mosaic_0001>

<llo_original>
// kernel: music_rnn_forward.1
$region0: #{music_rnn_forward.1}
  #allocation0 [shape = 'u32[]', space=smem, size = 0x4, offset = 0x4, fixed_abs, tag = 'smem constant byte address 0x4 - core index']
  #allocation1 [shape = 'u32[72,128]{1,0:T(1,128)}', space=vmem, size = 0x9000, scoped, tag = 'internal scratch']
  %s0 = inlined_call_operand.vmem [shape: f32[64,16], index: 0, kind: input, shape index: {}]
  %s1 = inlined_call_operand.vmem [shape: f32[64,16], index: 1, kind: input, shape index: {}]
  %s2 = inlined_call_operand.vmem [shape: f32[16,256], index: 2, kind: input, shape index: {}]
  %s3 = inlined_call_operand.vmem [shape: f32[16,256], index: 3, kind: input, shape index: {}]
  %s4 = inlined_call_operand.vmem [shape: f32[64,256], index: 4, kind: input, shape index: {}]
  %s5 = inlined_call_operand.vmem [shape: f32[1,256], index: 5, kind: input, shape index: {}]
  %s6 = inlined_call_operand.vmem [shape: f32[64,128], index: 6, kind: input, shape index: {}]
  %s7 = inlined_call_operand.vmem [shape: f32[1,128], index: 7, kind: input, shape index: {}]
  %s8 = inlined_call_operand.vmem [shape: f32[64,64], index: 8, kind: output, shape index: {0}]
  %s9 = inlined_call_operand.vmem [shape: f32[64,128], index: 9, kind: output, shape index: {1}]
  %10 = xla_tuple %s8, %s9
  %s11 = sld [smem:[#allocation0]]
  $region50: #{music_rnn_forward.1} parent=0
    _
  %s13 = ssub.s32 1, %s11
  %s14 = scalar_select 0, %s13, %s11
  // Predicated region
  $region2: #{music_rnn_forward.1} parent=0 // pred_check
    _
  $region3: #{music_rnn_forward.1} parent=0 // pred_check_branch
    %16 = sbr.rel (0) target = $region5
  $region4: #{music_rnn_forward.1} parent=0 // pred_region
    _
  $region5: #{music_rnn_forward.1} parent=0 // pred_fallthru
    _
  // Predicated region
  $region6: #{music_rnn_forward.1} parent=0 // pred_check
    _
  $region7: #{music_rnn_forward.1} parent=0 // pred_check_branch
    %18 = sbr.rel (0) target = $region9
  $region8: #{music_rnn_forward.1} parent=0 // pred_region
    _
  $region9: #{music_rnn_forward.1} parent=0 // pred_fallthru
    _
  // Predicated region
  $region10: #{music_rnn_forward.1} parent=0 // pred_check
    _
  $region11: #{music_rnn_forward.1} parent=0 // pred_check_branch
    %20 = sbr.rel (0) target = $region13
  $region12: #{music_rnn_forward.1} parent=0 // pred_region
    _
  $region13: #{music_rnn_forward.1} parent=0 // pred_fallthru
    _
  // Predicated region
  $region14: #{music_rnn_forward.1} parent=0 // pred_check
    _
  $region15: #{music_rnn_forward.1} parent=0 // pred_check_branch
    %22 = sbr.rel (0) target = $region17
  $region16: #{music_rnn_forward.1} parent=0 // pred_region
    _
  $region17: #{music_rnn_forward.1} parent=0 // pred_fallthru
    _
  // Predicated region
  $region18: #{music_rnn_forward.1} parent=0 // pred_check
    _
  $region19: #{music_rnn_forward.1} parent=0 // pred_check_branch
    %24 = sbr.rel (0) target = $region21
  $region20: #{music_rnn_forward.1} parent=0 // pred_region
    _
  $region21: #{music_rnn_forward.1} parent=0 // pred_fallthru
    _
  // Predicated region
  $region22: #{music_rnn_forward.1} parent=0 // pred_check
    _
  $region23: #{music_rnn_forward.1} parent=0 // pred_check_branch
    %26 = sbr.rel (0) target = $region25
  $region24: #{music_rnn_forward.1} parent=0 // pred_region
    _
  $region25: #{music_rnn_forward.1} parent=0 // pred_fallthru
    _
  // Predicated region
  $region26: #{music_rnn_forward.1} parent=0 // pred_check
    _
  $region27: #{music_rnn_forward.1} parent=0 // pred_check_branch
    %28 = sbr.rel (0) target = $region29
  $region28: #{music_rnn_forward.1} parent=0 // pred_region
    _
  $region29: #{music_rnn_forward.1} parent=0 // pred_fallthru
    _
  // Predicated region
  $region30: #{music_rnn_forward.1} parent=0 // pred_check
    _
  $region31: #{music_rnn_forward.1} parent=0 // pred_check_branch
    %30 = sbr.rel (0) target = $region33
  $region32: #{music_rnn_forward.1} parent=0 // pred_region
    _
  $region33: #{music_rnn_forward.1} parent=0 // pred_fallthru
    _
  %v31 = vld [vmem:[%s0] sm:$0xff]
  %v32 = vld [vmem:[%s0 + $0x8] sm:$0xff]
  %v33 = vld [vmem:[%s0 + $0x10] sm:$0xff]
  %v34 = vld [vmem:[%s0 + $0x18] sm:$0xff]
  %v35 = vld [vmem:[%s0 + $0x20] sm:$0xff]
  %v36 = vld [vmem:[%s0 + $0x28] sm:$0xff]
  %v37 = vld [vmem:[%s0 + $0x30] sm:$0xff]
  %v38 = vld [vmem:[%s0 + $0x38] sm:$0xff]
  %v39 = vld [vmem:[%s2] sm:$0xff]
  %v40 = vld [vmem:[%s2 + $0x8] sm:$0xff]
  %v41 = vld [vmem:[%s2 + $0x10] sm:$0xff]
  %v42 = vld [vmem:[%s2 + $0x18] sm:$0xff]
  %v43 = vld [vmem:[%s1] sm:$0xff]
  %v44 = vld [vmem:[%s1 + $0x8] sm:$0xff]
  %v45 = vld [vmem:[%s1 + $0x10] sm:$0xff]
  %v46 = vld [vmem:[%s1 + $0x18] sm:$0xff]
  %v47 = vld [vmem:[%s1 + $0x20] sm:$0xff]
  %v48 = vld [vmem:[%s1 + $0x28] sm:$0xff]
  %v49 = vld [vmem:[%s1 + $0x30] sm:$0xff]
  %v50 = vld [vmem:[%s1 + $0x38] sm:$0xff]
  %v51 = vld [vmem:[%s3] sm:$0xff]
  %v52 = vld [vmem:[%s3 + $0x8] sm:$0xff]
  %v53 = vld [vmem:[%s3 + $0x10] sm:$0xff]
  %v54 = vld [vmem:[%s3 + $0x18] sm:$0xff]
  %vm55 = vcmask 130048
  %v57 = vsel %vm55, %v43, 0
  %v60 = vsel %vm55, %v44, 0
  %v63 = vsel %vm55, %v45, 0
  %v66 = vsel %vm55, %v46, 0
  %v69 = vsel %vm55, %v47, 0
  %v72 = vsel %vm55, %v48, 0
  %v75 = vsel %vm55, %v49, 0
  %v78 = vsel %vm55, %v50, 0
  %80 = vmatpush.msra.mxu0 0.0
  %81 = vmatpush.msra.mxu0 0.0
  %82 = vmatpush.msra.mxu0 0.0
  %83 = vmatpush.msra.mxu0 0.0
  %84 = vmatpush.msra.mxu0 0.0
  %85 = vmatpush.msra.mxu0 0.0
  %86 = vmatpush.msra.mxu0 0.0
  %87 = vmatpush.msra.mxu0 0.0
  %88 = vmatpush.msra.mxu0 0.0
  %89 = vmatpush.msra.mxu0 0.0
  %90 = vmatpush.msra.mxu0 0.0
  %91 = vmatpush.msra.mxu0 0.0
  %92 = vmatpush.msra.mxu0 0.0
  %93 = vmatpush.msra.mxu0 0.0
  %94 = vmatpush.msra.mxu0 %v53
  %95 = vmatpush.msra.mxu0 %v51
  %96 = vmatmul.f32.gmra.mxu0 %v57
  %v97 = vpop.f32.mrf.mxu0
  %v98 = vadd.f32 0.0, %v97
  %99 = vmatmul.f32.gmra.mxu0 %v60
  %v100 = vpop.f32.mrf.mxu0
  %v101 = vadd.f32 0.0, %v100
  %102 = vmatmul.f32.gmra.mxu0 %v63
  %v103 = vpop.f32.mrf.mxu0
  %v104 = vadd.f32 0.0, %v103
  %105 = vmatmul.f32.gmra.mxu0 %v66
  %v106 = vpop.f32.mrf.mxu0
  %v107 = vadd.f32 0.0, %v106
  %108 = vmatmul.f32.gmra.mxu0 %v69
  %v109 = vpop.f32.mrf.mxu0
  %v110 = vadd.f32 0.0, %v109
  %111 = vmatmul.f32.gmra.mxu0 %v72
  %v112 = vpop.f32.mrf.mxu0
  %v113 = vadd.f32 0.0, %v112
  %114 = vmatmul.f32.gmra.mxu0 %v75
  %v115 = vpop.f32.mrf.mxu0
  %v116 = vadd.f32 0.0, %v115
  %117 = vmatmul.f32.gmra.mxu0 %v78
  %v118 = vpop.f32.mrf.mxu0
  %v119 = vadd.f32 0.0, %v118
  %120 = vdwg.mxu0
  %121 = vmatpush.msra.mxu0 0.0
  %122 = vmatpush.msra.mxu0 0.0
  %123 = vmatpush.msra.mxu0 0.0
  %124 = vmatpush.msra.mxu0 0.0
  %125 = vmatpush.msra.mxu0 0.0
  %126 = vmatpush.msra.mxu0 0.0
  %127 = vmatpush.msra.mxu0 0.0
  %128 = vmatpush.msra.mxu0 0.0
  %129 = vmatpush.msra.mxu0 0.0
  %130 = vmatpush.msra.mxu0 0.0
  %131 = vmatpush.msra.mxu0 0.0
  %132 = vmatpush.msra.mxu0 0.0
  %133 = vmatpush.msra.mxu0 0.0
  %134 = vmatpush.msra.mxu0 0.0
  %135 = vmatpush.msra.mxu0 %v54
  %136 = vmatpush.msra.mxu0 %v52
  %137 = vmatmul.f32.gmra.mxu0 %v57
  %v138 = vpop.f32.mrf.mxu0
  %v139 = vadd.f32 0.0, %v138
  %140 = vmatmul.f32.gmra.mxu0 %v60
  %v141 = vpop.f32.mrf.mxu0
  %v142 = vadd.f32 0.0, %v141
  %143 = vmatmul.f32.gmra.mxu0 %v63
  %v144 = vpop.f32.mrf.mxu0
  %v145 = vadd.f32 0.0, %v144
  %146 = vmatmul.f32.gmra.mxu0 %v66
  %v147 = vpop.f32.mrf.mxu0
  %v148 = vadd.f32 0.0, %v147
  %149 = vmatmul.f32.gmra.mxu0 %v69
  %v150 = vpop.f32.mrf.mxu0
  %v151 = vadd.f32 0.0, %v150
  %152 = vmatmul.f32.gmra.mxu0 %v72
  %v153 = vpop.f32.mrf.mxu0
  %v154 = vadd.f32 0.0, %v153
  %155 = vmatmul.f32.gmra.mxu0 %v75
  %v156 = vpop.f32.mrf.mxu0
  %v157 = vadd.f32 0.0, %v156
  %158 = vmatmul.f32.gmra.mxu0 %v78
  %v159 = vpop.f32.mrf.mxu0
  %v160 = vadd.f32 0.0, %v159
  %161 = vdwg.mxu0
  %v163 = vsel %vm55, %v31, 0
  %v166 = vsel %vm55, %v32, 0
  %v169 = vsel %vm55, %v33, 0
  %v172 = vsel %vm55, %v34, 0
  %v175 = vsel %vm55, %v35, 0
  %v178 = vsel %vm55, %v36, 0
  %v181 = vsel %vm55, %v37, 0
  %v184 = vsel %vm55, %v38, 0
  %186 = vmatpush.msra.mxu0 0.0
  %187 = vmatpush.msra.mxu0 0.0
  %188 = vmatpush.msra.mxu0 0.0
  %189 = vmatpush.msra.mxu0 0.0
  %190 = vmatpush.msra.mxu0 0.0
  %191 = vmatpush.msra.mxu0 0.0
  %192 = vmatpush.msra.mxu0 0.0
  %193 = vmatpush.msra.mxu0 0.0
  %194 = vmatpush.msra.mxu0 0.0
  %195 = vmatpush.msra.mxu0 0.0
  %196 = vmatpush.msra.mxu0 0.0
  %197 = vmatpush.msra.mxu0 0.0
  %198 = vmatpush.msra.mxu0 0.0
  %199 = vmatpush.msra.mxu0 0.0
  %200 = vmatpush.msra.mxu0 %v41
  %201 = vmatpush.msra.mxu0 %v39
  %202 = vmatmul.f32.gmra.mxu0 %v163
  %v203 = vpop.f32.mrf.mxu0
  %v204 = vadd.f32 %v98, %v203
  %205 = vmatmul.f32.gmra.mxu0 %v166
  %v206 = vpop.f32.mrf.mxu0
  %v207 = vadd.f32 %v101, %v206
  %208 = vmatmul.f32.gmra.mxu0 %v169
  %v209 = vpop.f32.mrf.mxu0
  %v210 = vadd.f32 %v104, %v209
  %211 = vmatmul.f32.gmra.mxu0 %v172
  %v212 = vpop.f32.mrf.mxu0
  %v213 = vadd.f32 %v107, %v212
  %214 = vmatmul.f32.gmra.mxu0 %v175
  %v215 = vpop.f32.mrf.mxu0
  %v216 = vadd.f32 %v110, %v215
  %217 = vmatmul.f32.gmra.mxu0 %v178
  %v218 = vpop.f32.mrf.mxu0
  %v219 = vadd.f32 %v113, %v218
  %220 = vmatmul.f32.gmra.mxu0 %v181
  %v221 = vpop.f32.mrf.mxu0
  %v222 = vadd.f32 %v116, %v221
  %223 = vmatmul.f32.gmra.mxu0 %v184
  %v224 = vpop.f32.mrf.mxu0
  %v225 = vadd.f32 %v119, %v224
  %226 = vdwg.mxu0
  %227 = vmatpush.msra.mxu0 0.0
  %228 = vmatpush.msra.mxu0 0.0
  %229 = vmatpush.msra.mxu0 0.0
  %230 = vmatpush.msra.mxu0 0.0
  %231 = vmatpush.msra.mxu0 0.0
  %232 = vmatpush.msra.mxu0 0.0
  %233 = vmatpush.msra.mxu0 0.0
  %234 = vmatpush.msra.mxu0 0.0
  %235 = vmatpush.msra.mxu0 0.0
  %236 = vmatpush.msra.mxu0 0.0
  %237 = vmatpush.msra.mxu0 0.0
  %238 = vmatpush.msra.mxu0 0.0
  %239 = vmatpush.msra.mxu0 0.0
  %240 = vmatpush.msra.mxu0 0.0
  %241 = vmatpush.msra.mxu0 %v42
  %242 = vmatpush.msra.mxu0 %v40
  %243 = vmatmul.f32.gmra.mxu0 %v163
  %v244 = vpop.f32.mrf.mxu0
  %v245 = vadd.f32 %v139, %v244
  %246 = vmatmul.f32.gmra.mxu0 %v166
  %v247 = vpop.f32.mrf.mxu0
  %v248 = vadd.f32 %v142, %v247
  %249 = vmatmul.f32.gmra.mxu0 %v169
  %v250 = vpop.f32.mrf.mxu0
  %v251 = vadd.f32 %v145, %v250
  %252 = vmatmul.f32.gmra.mxu0 %v172
  %v253 = vpop.f32.mrf.mxu0
  %v254 = vadd.f32 %v148, %v253
  %255 = vmatmul.f32.gmra.mxu0 %v175
  %v256 = vpop.f32.mrf.mxu0
  %v257 = vadd.f32 %v151, %v256
  %258 = vmatmul.f32.gmra.mxu0 %v178
  %v259 = vpop.f32.mrf.mxu0
  %v260 = vadd.f32 %v154, %v259
  %261 = vmatmul.f32.gmra.mxu0 %v181
  %v262 = vpop.f32.mrf.mxu0
  %v263 = vadd.f32 %v157, %v262
  %264 = vmatmul.f32.gmra.mxu0 %v184
  %v265 = vpop.f32.mrf.mxu0
  %v266 = vadd.f32 %v160, %v265
  %267 = vdwg.mxu0
  %v268 = vld [vmem:[%s5] sm:$0x3]
  %v270 = vperm.slane %v268, 0
  %v271 = vperm.slane %v268, 1
  %v274 = vadd.f32 %v204, %v270
  %v275 = vadd.f32 %v245, %v271
  %v276 = vadd.f32 %v207, %v270
  %v277 = vadd.f32 %v248, %v271
  %v278 = vadd.f32 %v210, %v270
  %v279 = vadd.f32 %v251, %v271
  %v280 = vadd.f32 %v213, %v270
  %v281 = vadd.f32 %v254, %v271
  %v282 = vadd.f32 %v216, %v270
  %v283 = vadd.f32 %v257, %v271
  %v284 = vadd.f32 %v219, %v270
  %v285 = vadd.f32 %v260, %v271
  %v286 = vadd.f32 %v222, %v270
  %v287 = vadd.f32 %v263, %v271
  %v288 = vadd.f32 %v225, %v270
  %v289 = vadd.f32 %v266, %v271
  %v290 = vld [vmem:[%s4] sm:$0xff]
  %v291 = vld [vmem:[%s4 + $0x8] sm:$0xff]
  %v292 = vld [vmem:[%s4 + $0x10] sm:$0xff]
  %v293 = vld [vmem:[%s4 + $0x18] sm:$0xff]
  %v294 = vld [vmem:[%s4 + $0x20] sm:$0xff]
  %v295 = vld [vmem:[%s4 + $0x28] sm:$0xff]
  %v296 = vld [vmem:[%s4 + $0x30] sm:$0xff]
  %v297 = vld [vmem:[%s4 + $0x38] sm:$0xff]
  %v298 = vld [vmem:[%s4 + $0x40] sm:$0xff]
  %v299 = vld [vmem:[%s4 + $0x48] sm:$0xff]
  %v300 = vld [vmem:[%s4 + $0x50] sm:$0xff]
  %v301 = vld [vmem:[%s4 + $0x58] sm:$0xff]
  %v302 = vld [vmem:[%s4 + $0x60] sm:$0xff]
  %v303 = vld [vmem:[%s4 + $0x68] sm:$0xff]
  %v304 = vld [vmem:[%s4 + $0x70] sm:$0xff]
  %v305 = vld [vmem:[%s4 + $0x78] sm:$0xff]
  %vm306 = vcmask 523264
  %v308 = vsel %vm306, 0.0, 0
  %310 = vmatpush.msra.mxu0 0.0
  %311 = vmatpush.msra.mxu0 0.0
  %312 = vmatpush.msra.mxu0 0.0
  %313 = vmatpush.msra.mxu0 0.0
  %314 = vmatpush.msra.mxu0 0.0
  %315 = vmatpush.msra.mxu0 0.0
  %316 = vmatpush.msra.mxu0 0.0
  %317 = vmatpush.msra.mxu0 0.0
  %318 = vmatpush.msra.mxu0 %v304
  %319 = vmatpush.msra.mxu0 %v302
  %320 = vmatpush.msra.mxu0 %v300
  %321 = vmatpush.msra.mxu0 %v298
  %322 = vmatpush.msra.mxu0 %v296
  %323 = vmatpush.msra.mxu0 %v294
  %324 = vmatpush.msra.mxu0 %v292
  %325 = vmatpush.msra.mxu0 %v290
  %326 = vmatmul.f32.gmra.mxu0 %v308
  %v327 = vpop.f32.mrf.mxu0
  %v328 = vadd.f32 0.0, %v327
  %329 = vdwg.mxu0
  %330 = vmatpush.msra.mxu0 0.0
  %331 = vmatpush.msra.mxu0 0.0
  %332 = vmatpush.msra.mxu0 0.0
  %333 = vmatpush.msra.mxu0 0.0
  %334 = vmatpush.msra.mxu0 0.0
  %335 = vmatpush.msra.mxu0 0.0
  %336 = vmatpush.msra.mxu0 0.0
  %337 = vmatpush.msra.mxu0 0.0
  %338 = vmatpush.msra.mxu0 %v305
  %339 = vmatpush.msra.mxu0 %v303
  %340 = vmatpush.msra.mxu0 %v301
  %341 = vmatpush.msra.mxu0 %v299
  %342 = vmatpush.msra.mxu0 %v297
  %343 = vmatpush.msra.mxu0 %v295
  %344 = vmatpush.msra.mxu0 %v293
  %345 = vmatpush.msra.mxu0 %v291
  %346 = vmatmul.f32.gmra.mxu0 %v308
  %v347 = vpop.f32.mrf.mxu0
  %v348 = vadd.f32 0.0, %v347
  %349 = vdwg.mxu0
  %v350 = vadd.f32 %v274, %v328
  %v351 = vadd.f32 %v275, %v348
  %v352 = vxor.u32 %v350, 2147483648
  %v353 = vxor.u32 %v351, 2147483648
  %v354 = vmul.f32 %v352, 1.442695
  %v355 = vpow.pop %v354
  %v356 = vmul.f32 %v353, 1.442695
  %v357 = vpow.pop %v356
  %v358 = vadd.f32 %v355, 1.0
  %v359 = vadd.f32 %v357, 1.0
  %v360 = vrcp.pop %v358
  %v361 = vmul.f32 %v358, %v360
  %v362 = vsub.f32 1.0, %v361
  %v363 = vmul.f32 %v360, %v362
  %v364 = vadd.f32 %v360, %v363
  %vm365 = vweird.f32 %v358
  %vm366 = vweird.f32 %v360
  %vm367 = vmor %vm365, %vm366
  %v368 = vsel %vm367, %v360, %v364
  %v369 = vand.u32 2147483647, %v358
  %vm370 = vcmp.eq.f32.partialorder %v369, 8.507059e+37
  %v371 = vand.u32 %v358, 2147483648
  %v372 = vor.u32 1.1754944e-38, %v371
  %v373 = vsel %vm370, %v372, %v368
  %v374 = vmul.f32 1.0, %v373
  %v375 = vrcp.pop %v359
  %v376 = vmul.f32 %v359, %v375
  %v377 = vsub.f32 1.0, %v376
  %v378 = vmul.f32 %v375, %v377
  %v379 = vadd.f32 %v375, %v378
  %vm380 = vweird.f32 %v359
  %vm381 = vweird.f32 %v375
  %vm382 = vmor %vm380, %vm381
  %v383 = vsel %vm382, %v375, %v379
  %v384 = vand.u32 2147483647, %v359
  %vm385 = vcmp.eq.f32.partialorder %v384, 8.507059e+37
  %v386 = vand.u32 %v359, 2147483648
  %v387 = vor.u32 1.1754944e-38, %v386
  %v388 = vsel %vm385, %v387, %v383
  %v389 = vmul.f32 1.0, %v388
  %v390 = vtanh.pop %v351
  %v391 = vmul.f32 %v374, 0.0
  %v392 = vmul.f32 %v374, %v390
  %394 = vrot.lane.b32.xlu0 %v392, 64
  %v395 = vpop.permute.xlu0 %394
  %v397 = vadd.f32 %v391, %v395
  %v398 = vtanh.pop %v397
  %v399 = vmul.f32 %v389, %v398
  %401 = vrot.lane.b32.xlu0 %v399, 64
  %v402 = vpop.permute.xlu0 %401
  %404 = vst.msk [vmem:[%s8] sm:$0xff] %vm306, %v402
  %v405 = vsel %vm306, %v402, 0
  %407 = vmatpush.msra.mxu0 0.0
  %408 = vmatpush.msra.mxu0 0.0
  %409 = vmatpush.msra.mxu0 0.0
  %410 = vmatpush.msra.mxu0 0.0
  %411 = vmatpush.msra.mxu0 0.0
  %412 = vmatpush.msra.mxu0 0.0
  %413 = vmatpush.msra.mxu0 0.0
  %414 = vmatpush.msra.mxu0 0.0
  %415 = vmatpush.msra.mxu0 %v304
  %416 = vmatpush.msra.mxu0 %v302
  %417 = vmatpush.msra.mxu0 %v300
  %418 = vmatpush.msra.mxu0 %v298
  %419 = vmatpush.msra.mxu0 %v296
  %420 = vmatpush.msra.mxu0 %v294
  %421 = vmatpush.msra.mxu0 %v292
  %422 = vmatpush.msra.mxu0 %v290
  %423 = vmatmul.f32.gmra.mxu0 %v405
  %v424 = vpop.f32.mrf.mxu0
  %v425 = vadd.f32 0.0, %v424
  %426 = vdwg.mxu0
  %427 = vmatpush.msra.mxu0 0.0
  %428 = vmatpush.msra.mxu0 0.0
  %429 = vmatpush.msra.mxu0 0.0
  %430 = vmatpush.msra.mxu0 0.0
  %431 = vmatpush.msra.mxu0 0.0
  %432 = vmatpush.msra.mxu0 0.0
  %433 = vmatpush.msra.mxu0 0.0
  %434 = vmatpush.msra.mxu0 0.0
  %435 = vmatpush.msra.mxu0 %v305
  %436 = vmatpush.msra.mxu0 %v303
  %437 = vmatpush.msra.mxu0 %v301
  %438 = vmatpush.msra.mxu0 %v299
  %439 = vmatpush.msra.mxu0 %v297
  %440 = vmatpush.msra.mxu0 %v295
  %441 = vmatpush.msra.mxu0 %v293
  %442 = vmatpush.msra.mxu0 %v291
  %443 = vmatmul.f32.gmra.mxu0 %v405
  %v444 = vpop.f32.mrf.mxu0
  %v445 = vadd.f32 0.0, %v444
  %446 = vdwg.mxu0
  %v447 = vadd.f32 %v276, %v425
  %v448 = vadd.f32 %v277, %v445
  %v449 = vxor.u32 %v447, 2147483648
  %v450 = vxor.u32 %v448, 2147483648
  %v451 = vmul.f32 %v449, 1.442695
  %v452 = vpow.pop %v451
  %v453 = vmul.f32 %v450, 1.442695
  %v454 = vpow.pop %v453
  %v455 = vadd.f32 %v452, 1.0
  %v456 = vadd.f32 %v454, 1.0
  %v457 = vrcp.pop %v455
  %v458 = vmul.f32 %v455, %v457
  %v459 = vsub.f32 1.0, %v458
  %v460 = vmul.f32 %v457, %v459
  %v461 = vadd.f32 %v457, %v460
  %vm462 = vweird.f32 %v455
  %vm463 = vweird.f32 %v457
  %vm464 = vmor %vm462, %vm463
  %v465 = vsel %vm464, %v457, %v461
  %v466 = vand.u32 2147483647, %v455
  %vm467 = vcmp.eq.f32.partialorder %v466, 8.507059e+37
  %v468 = vand.u32 %v455, 2147483648
  %v469 = vor.u32 1.1754944e-38, %v468
  %v470 = vsel %vm467, %v469, %v465
  %v471 = vmul.f32 1.0, %v470
  %v472 = vrcp.pop %v456
  %v473 = vmul.f32 %v456, %v472
  %v474 = vsub.f32 1.0, %v473
  %v475 = vmul.f32 %v472, %v474
  %v476 = vadd.f32 %v472, %v475
  %vm477 = vweird.f32 %v456
  %vm478 = vweird.f32 %v472
  %vm479 = vmor %vm477, %vm478
  %v480 = vsel %vm479, %v472, %v476
  %v481 = vand.u32 2147483647, %v456
  %vm482 = vcmp.eq.f32.partialorder %v481, 8.507059e+37
  %v483 = vand.u32 %v456, 2147483648
  %v484 = vor.u32 1.1754944e-38, %v483
  %v485 = vsel %vm482, %v484, %v480
  %v486 = vmul.f32 1.0, %v485
  %v487 = vtanh.pop %v448
  %v488 = vmul.f32 %v471, %v397
  %v489 = vmul.f32 %v471, %v487
  %491 = vrot.lane.b32.xlu0 %v489, 64
  %v492 = vpop.permute.xlu0 %491
  %v494 = vadd.f32 %v488, %v492
  %v495 = vtanh.pop %v494
  %v496 = vmul.f32 %v486, %v495
  %498 = vrot.lane.b32.xlu0 %v496, 64
  %v499 = vpop.permute.xlu0 %498
  %501 = vst.msk [vmem:[%s8 + $0x8] sm:$0xff] %vm306, %v499
  %v502 = vsel %vm306, %v499, 0
  %504 = vmatpush.msra.mxu0 0.0
  %505 = vmatpush.msra.mxu0 0.0
  %506 = vmatpush.msra.mxu0 0.0
  %507 = vmatpush.msra.mxu0 0.0
  %508 = vmatpush.msra.mxu0 0.0
  %509 = vmatpush.msra.mxu0 0.0
  %510 = vmatpush.msra.mxu0 0.0
  %511 = vmatpush.msra.mxu0 0.0
  %512 = vmatpush.msra.mxu0 %v304
  %513 = vmatpush.msra.mxu0 %v302
  %514 = vmatpush.msra.mxu0 %v300
  %515 = vmatpush.msra.mxu0 %v298
  %516 = vmatpush.msra.mxu0 %v296
  %517 = vmatpush.msra.mxu0 %v294
  %518 = vmatpush.msra.mxu0 %v292
  %519 = vmatpush.msra.mxu0 %v290
  %520 = vmatmul.f32.gmra.mxu0 %v502
  %v521 = vpop.f32.mrf.mxu0
  %v522 = vadd.f32 0.0, %v521
  %523 = vdwg.mxu0
  %524 = vmatpush.msra.mxu0 0.0
  %525 = vmatpush.msra.mxu0 0.0
  %526 = vmatpush.msra.mxu0 0.0
  %527 = vmatpush.msra.mxu0 0.0
  %528 = vmatpush.msra.mxu0 0.0
  %529 = vmatpush.msra.mxu0 0.0
  %530 = vmatpush.msra.mxu0 0.0
  %531 = vmatpush.msra.mxu0 0.0
  %532 = vmatpush.msra.mxu0 %v305
  %533 = vmatpush.msra.mxu0 %v303
  %534 = vmatpush.msra.mxu0 %v301
  %535 = vmatpush.msra.mxu0 %v299
  %536 = vmatpush.msra.mxu0 %v297
  %537 = vmatpush.msra.mxu0 %v295
  %538 = vmatpush.msra.mxu0 %v293
  %539 = vmatpush.msra.mxu0 %v291
  %540 = vmatmul.f32.gmra.mxu0 %v502
  %v541 = vpop.f32.mrf.mxu0
  %v542 = vadd.f32 0.0, %v541
  %543 = vdwg.mxu0
  %v544 = vadd.f32 %v278, %v522
  %v545 = vadd.f32 %v279, %v542
  %v546 = vxor.u32 %v544, 2147483648
  %v547 = vxor.u32 %v545, 2147483648
  %v548 = vmul.f32 %v546, 1.442695
  %v549 = vpow.pop %v548
  %v550 = vmul.f32 %v547, 1.442695
  %v551 = vpow.pop %v550
  %v552 = vadd.f32 %v549, 1.0
  %v553 = vadd.f32 %v551, 1.0
  %v554 = vrcp.pop %v552
  %v555 = vmul.f32 %v552, %v554
  %v556 = vsub.f32 1.0, %v555
  %v557 = vmul.f32 %v554, %v556
  %v558 = vadd.f32 %v554, %v557
  %vm559 = vweird.f32 %v552
  %vm560 = vweird.f32 %v554
  %vm561 = vmor %vm559, %vm560
  %v562 = vsel %vm561, %v554, %v558
  %v563 = vand.u32 2147483647, %v552
  %vm564 = vcmp.eq.f32.partialorder %v563, 8.507059e+37
  %v565 = vand.u32 %v552, 2147483648
  %v566 = vor.u32 1.1754944e-38, %v565
  %v567 = vsel %vm564, %v566, %v562
  %v568 = vmul.f32 1.0, %v567
  %v569 = vrcp.pop %v553
  %v570 = vmul.f32 %v553, %v569
  %v571 = vsub.f32 1.0, %v570
  %v572 = vmul.f32 %v569, %v571
  %v573 = vadd.f32 %v569, %v572
  %vm574 = vweird.f32 %v553
  %vm575 = vweird.f32 %v569
  %vm576 = vmor %vm574, %vm575
  %v577 = vsel %vm576, %v569, %v573
  %v578 = vand.u32 2147483647, %v553
  %vm579 = vcmp.eq.f32.partialorder %v578, 8.507059e+37
  %v580 = vand.u32 %v553, 2147483648
  %v581 = vor.u32 1.1754944e-38, %v580
  %v582 = vsel %vm579, %v581, %v577
  %v583 = vmul.f32 1.0, %v582
  %v584 = vtanh.pop %v545
  %v585 = vmul.f32 %v568, %v494
  %v586 = vmul.f32 %v568, %v584
  %588 = vrot.lane.b32.xlu0 %v586, 64
  %v589 = vpop.permute.xlu0 %588
  %v591 = vadd.f32 %v585, %v589
  %v592 = vtanh.pop %v591
  %v593 = vmul.f32 %v583, %v592
  %595 = vrot.lane.b32.xlu0 %v593, 64
  %v596 = vpop.permute.xlu0 %595
  %598 = vst.msk [vmem:[%s8 + $0x10] sm:$0xff] %vm306, %v596
  %v599 = vsel %vm306, %v596, 0
  %601 = vmatpush.msra.mxu0 0.0
  %602 = vmatpush.msra.mxu0 0.0
  %603 = vmatpush.msra.mxu0 0.0
  %604 = vmatpush.msra.mxu0 0.0
  %605 = vmatpush.msra.mxu0 0.0
  %606 = vmatpush.msra.mxu0 0.0
  %607 = vmatpush.msra.mxu0 0.0
  %608 = vmatpush.msra.mxu0 0.0
  %609 = vmatpush.msra.mxu0 %v304
  %610 = vmatpush.msra.mxu0 %v302
  %611 = vmatpush.msra.mxu0 %v300
  %612 = vmatpush.msra.mxu0 %v298
  %613 = vmatpush.msra.mxu0 %v296
  %614 = vmatpush.msra.mxu0 %v294
  %615 = vmatpush.msra.mxu0 %v292
  %616 = vmatpush.msra.mxu0 %v290
  %617 = vmatmul.f32.gmra.mxu0 %v599
  %v618 = vpop.f32.mrf.mxu0
  %v619 = vadd.f32 0.0, %v618
  %620 = vdwg.mxu0
  %621 = vmatpush.msra.mxu0 0.0
  %622 = vmatpush.msra.mxu0 0.0
  %623 = vmatpush.msra.mxu0 0.0
  %624 = vmatpush.msra.mxu0 0.0
  %625 = vmatpush.msra.mxu0 0.0
  %626 = vmatpush.msra.mxu0 0.0
  %627 = vmatpush.msra.mxu0 0.0
  %628 = vmatpush.msra.mxu0 0.0
  %629 = vmatpush.msra.mxu0 %v305
  %630 = vmatpush.msra.mxu0 %v303
  %631 = vmatpush.msra.mxu0 %v301
  %632 = vmatpush.msra.mxu0 %v299
  %633 = vmatpush.msra.mxu0 %v297
  %634 = vmatpush.msra.mxu0 %v295
  %635 = vmatpush.msra.mxu0 %v293
  %636 = vmatpush.msra.mxu0 %v291
  %637 = vmatmul.f32.gmra.mxu0 %v599
  %v638 = vpop.f32.mrf.mxu0
  %v639 = vadd.f32 0.0, %v638
  %640 = vdwg.mxu0
  %v641 = vadd.f32 %v280, %v619
  %v642 = vadd.f32 %v281, %v639
  %v643 = vxor.u32 %v641, 2147483648
  %v644 = vxor.u32 %v642, 2147483648
  %v645 = vmul.f32 %v643, 1.442695
  %v646 = vpow.pop %v645
  %v647 = vmul.f32 %v644, 1.442695
  %v648 = vpow.pop %v647
  %v649 = vadd.f32 %v646, 1.0
  %v650 = vadd.f32 %v648, 1.0
  %v651 = vrcp.pop %v649
  %v652 = vmul.f32 %v649, %v651
  %v653 = vsub.f32 1.0, %v652
  %v654 = vmul.f32 %v651, %v653
  %v655 = vadd.f32 %v651, %v654
  %vm656 = vweird.f32 %v649
  %vm657 = vweird.f32 %v651
  %vm658 = vmor %vm656, %vm657
  %v659 = vsel %vm658, %v651, %v655
  %v660 = vand.u32 2147483647, %v649
  %vm661 = vcmp.eq.f32.partialorder %v660, 8.507059e+37
  %v662 = vand.u32 %v649, 2147483648
  %v663 = vor.u32 1.1754944e-38, %v662
  %v664 = vsel %vm661, %v663, %v659
  %v665 = vmul.f32 1.0, %v664
  %v666 = vrcp.pop %v650
  %v667 = vmul.f32 %v650, %v666
  %v668 = vsub.f32 1.0, %v667
  %v669 = vmul.f32 %v666, %v668
  %v670 = vadd.f32 %v666, %v669
  %vm671 = vweird.f32 %v650
  %vm672 = vweird.f32 %v666
  %vm673 = vmor %vm671, %vm672
  %v674 = vsel %vm673, %v666, %v670
  %v675 = vand.u32 2147483647, %v650
  %vm676 = vcmp.eq.f32.partialorder %v675, 8.507059e+37
  %v677 = vand.u32 %v650, 2147483648
  %v678 = vor.u32 1.1754944e-38, %v677
  %v679 = vsel %vm676, %v678, %v674
  %v680 = vmul.f32 1.0, %v679
  %v681 = vtanh.pop %v642
  %v682 = vmul.f32 %v665, %v591
  %v683 = vmul.f32 %v665, %v681
  %685 = vrot.lane.b32.xlu0 %v683, 64
  %v686 = vpop.permute.xlu0 %685
  %v688 = vadd.f32 %v682, %v686
  %v689 = vtanh.pop %v688
  %v690 = vmul.f32 %v680, %v689
  %692 = vrot.lane.b32.xlu0 %v690, 64
  %v693 = vpop.permute.xlu0 %692
  %695 = vst.msk [vmem:[%s8 + $0x18] sm:$0xff] %vm306, %v693
  %v696 = vsel %vm306, %v693, 0
  %698 = vmatpush.msra.mxu0 0.0
  %699 = vmatpush.msra.mxu0 0.0
  %700 = vmatpush.msra.mxu0 0.0
  %701 = vmatpush.msra.mxu0 0.0
  %702 = vmatpush.msra.mxu0 0.0
  %703 = vmatpush.msra.mxu0 0.0
  %704 = vmatpush.msra.mxu0 0.0
  %705 = vmatpush.msra.mxu0 0.0
  %706 = vmatpush.msra.mxu0 %v304
  %707 = vmatpush.msra.mxu0 %v302
  %708 = vmatpush.msra.mxu0 %v300
  %709 = vmatpush.msra.mxu0 %v298
  %710 = vmatpush.msra.mxu0 %v296
  %711 = vmatpush.msra.mxu0 %v294
  %712 = vmatpush.msra.mxu0 %v292
  %713 = vmatpush.msra.mxu0 %v290
  %714 = vmatmul.f32.gmra.mxu0 %v696
  %v715 = vpop.f32.mrf.mxu0
  %v716 = vadd.f32 0.0, %v715
  %717 = vdwg.mxu0
  %718 = vmatpush.msra.mxu0 0.0
  %719 = vmatpush.msra.mxu0 0.0
  %720 = vmatpush.msra.mxu0 0.0
  %721 = vmatpush.msra.mxu0 0.0
  %722 = vmatpush.msra.mxu0 0.0
  %723 = vmatpush.msra.mxu0 0.0
  %724 = vmatpush.msra.mxu0 0.0
  %725 = vmatpush.msra.mxu0 0.0
  %726 = vmatpush.msra.mxu0 %v305
  %727 = vmatpush.msra.mxu0 %v303
  %728 = vmatpush.msra.mxu0 %v301
  %729 = vmatpush.msra.mxu0 %v299
  %730 = vmatpush.msra.mxu0 %v297
  %731 = vmatpush.msra.mxu0 %v295
  %732 = vmatpush.msra.mxu0 %v293
  %733 = vmatpush.msra.mxu0 %v291
  %734 = vmatmul.f32.gmra.mxu0 %v696
  %v735 = vpop.f32.mrf.mxu0
  %v736 = vadd.f32 0.0, %v735
  %737 = vdwg.mxu0
  %v738 = vadd.f32 %v282, %v716
  %v739 = vadd.f32 %v283, %v736
  %v740 = vxor.u32 %v738, 2147483648
  %v741 = vxor.u32 %v739, 2147483648
  %v742 = vmul.f32 %v740, 1.442695
  %v743 = vpow.pop %v742
  %v744 = vmul.f32 %v741, 1.442695
  %v745 = vpow.pop %v744
  %v746 = vadd.f32 %v743, 1.0
  %v747 = vadd.f32 %v745, 1.0
  %v748 = vrcp.pop %v746
  %v749 = vmul.f32 %v746, %v748
  %v750 = vsub.f32 1.0, %v749
  %v751 = vmul.f32 %v748, %v750
  %v752 = vadd.f32 %v748, %v751
  %vm753 = vweird.f32 %v746
  %vm754 = vweird.f32 %v748
  %vm755 = vmor %vm753, %vm754
  %v756 = vsel %vm755, %v748, %v752
  %v757 = vand.u32 2147483647, %v746
  %vm758 = vcmp.eq.f32.partialorder %v757, 8.507059e+37
  %v759 = vand.u32 %v746, 2147483648
  %v760 = vor.u32 1.1754944e-38, %v759
  %v761 = vsel %vm758, %v760, %v756
  %v762 = vmul.f32 1.0, %v761
  %v763 = vrcp.pop %v747
  %v764 = vmul.f32 %v747, %v763
  %v765 = vsub.f32 1.0, %v764
  %v766 = vmul.f32 %v763, %v765
  %v767 = vadd.f32 %v763, %v766
  %vm768 = vweird.f32 %v747
  %vm769 = vweird.f32 %v763
  %vm770 = vmor %vm768, %vm769
  %v771 = vsel %vm770, %v763, %v767
  %v772 = vand.u32 2147483647, %v747
  %vm773 = vcmp.eq.f32.partialorder %v772, 8.507059e+37
  %v774 = vand.u32 %v747, 2147483648
  %v775 = vor.u32 1.1754944e-38, %v774
  %v776 = vsel %vm773, %v775, %v771
  %v777 = vmul.f32 1.0, %v776
  %v778 = vtanh.pop %v739
  %v779 = vmul.f32 %v762, %v688
  %v780 = vmul.f32 %v762, %v778
  %782 = vrot.lane.b32.xlu0 %v780, 64
  %v783 = vpop.permute.xlu0 %782
  %v785 = vadd.f32 %v779, %v783
  %v786 = vtanh.pop %v785
  %v787 = vmul.f32 %v777, %v786
  %789 = vrot.lane.b32.xlu0 %v787, 64
  %v790 = vpop.permute.xlu0 %789
  %792 = vst.msk [vmem:[%s8 + $0x20] sm:$0xff] %vm306, %v790
  %v793 = vsel %vm306, %v790, 0
  %795 = vmatpush.msra.mxu0 0.0
  %796 = vmatpush.msra.mxu0 0.0
  %797 = vmatpush.msra.mxu0 0.0
  %798 = vmatpush.msra.mxu0 0.0
  %799 = vmatpush.msra.mxu0 0.0
  %800 = vmatpush.msra.mxu0 0.0
  %801 = vmatpush.msra.mxu0 0.0
  %802 = vmatpush.msra.mxu0 0.0
  %803 = vmatpush.msra.mxu0 %v304
  %804 = vmatpush.msra.mxu0 %v302
  %805 = vmatpush.msra.mxu0 %v300
  %806 = vmatpush.msra.mxu0 %v298
  %807 = vmatpush.msra.mxu0 %v296
  %808 = vmatpush.msra.mxu0 %v294
  %809 = vmatpush.msra.mxu0 %v292
  %810 = vmatpush.msra.mxu0 %v290
  %811 = vmatmul.f32.gmra.mxu0 %v793
  %v812 = vpop.f32.mrf.mxu0
  %v813 = vadd.f32 0.0, %v812
  %814 = vdwg.mxu0
  %815 = vmatpush.msra.mxu0 0.0
  %816 = vmatpush.msra.mxu0 0.0
  %817 = vmatpush.msra.mxu0 0.0
  %818 = vmatpush.msra.mxu0 0.0
  %819 = vmatpush.msra.mxu0 0.0
  %820 = vmatpush.msra.mxu0 0.0
  %821 = vmatpush.msra.mxu0 0.0
  %822 = vmatpush.msra.mxu0 0.0
  %823 = vmatpush.msra.mxu0 %v305
  %824 = vmatpush.msra.mxu0 %v303
  %825 = vmatpush.msra.mxu0 %v301
  %826 = vmatpush.msra.mxu0 %v299
  %827 = vmatpush.msra.mxu0 %v297
  %828 = vmatpush.msra.mxu0 %v295
  %829 = vmatpush.msra.mxu0 %v293
  %830 = vmatpush.msra.mxu0 %v291
  %831 = vmatmul.f32.gmra.mxu0 %v793
  %v832 = vpop.f32.mrf.mxu0
  %v833 = vadd.f32 0.0, %v832
  %834 = vdwg.mxu0
  %v835 = vadd.f32 %v284, %v813
  %v836 = vadd.f32 %v285, %v833
  %v837 = vxor.u32 %v835, 2147483648
  %v838 = vxor.u32 %v836, 2147483648
  %v839 = vmul.f32 %v837, 1.442695
  %v840 = vpow.pop %v839
  %v841 = vmul.f32 %v838, 1.442695
  %v842 = vpow.pop %v841
  %v843 = vadd.f32 %v840, 1.0
  %v844 = vadd.f32 %v842, 1.0
  %v845 = vrcp.pop %v843
  %v846 = vmul.f32 %v843, %v845
  %v847 = vsub.f32 1.0, %v846
  %v848 = vmul.f32 %v845, %v847
  %v849 = vadd.f32 %v845, %v848
  %vm850 = vweird.f32 %v843
  %vm851 = vweird.f32 %v845
  %vm852 = vmor %vm850, %vm851
  %v853 = vsel %vm852, %v845, %v849
  %v854 = vand.u32 2147483647, %v843
  %vm855 = vcmp.eq.f32.partialorder %v854, 8.507059e+37
  %v856 = vand.u32 %v843, 2147483648
  %v857 = vor.u32 1.1754944e-38, %v856
  %v858 = vsel %vm855, %v857, %v853
  %v859 = vmul.f32 1.0, %v858
  %v860 = vrcp.pop %v844
  %v861 = vmul.f32 %v844, %v860
  %v862 = vsub.f32 1.0, %v861
  %v863 = vmul.f32 %v860, %v862
  %v864 = vadd.f32 %v860, %v863
  %vm865 = vweird.f32 %v844
  %vm866 = vweird.f32 %v860
  %vm867 = vmor %vm865, %vm866
  %v868 = vsel %vm867, %v860, %v864
  %v869 = vand.u32 2147483647, %v844
  %vm870 = vcmp.eq.f32.partialorder %v869, 8.507059e+37
  %v871 = vand.u32 %v844, 2147483648
  %v872 = vor.u32 1.1754944e-38, %v871
  %v873 = vsel %vm870, %v872, %v868
  %v874 = vmul.f32 1.0, %v873
  %v875 = vtanh.pop %v836
  %v876 = vmul.f32 %v859, %v785
  %v877 = vmul.f32 %v859, %v875
  %879 = vrot.lane.b32.xlu0 %v877, 64
  %v880 = vpop.permute.xlu0 %879
  %v882 = vadd.f32 %v876, %v880
  %v883 = vtanh.pop %v882
  %v884 = vmul.f32 %v874, %v883
  %886 = vrot.lane.b32.xlu0 %v884, 64
  %v887 = vpop.permute.xlu0 %886
  %889 = vst.msk [vmem:[%s8 + $0x28] sm:$0xff] %vm306, %v887
  %v890 = vsel %vm306, %v887, 0
  %892 = vmatpush.msra.mxu0 0.0
  %893 = vmatpush.msra.mxu0 0.0
  %894 = vmatpush.msra.mxu0 0.0
  %895 = vmatpush.msra.mxu0 0.0
  %896 = vmatpush.msra.mxu0 0.0
  %897 = vmatpush.msra.mxu0 0.0
  %898 = vmatpush.msra.mxu0 0.0
  %899 = vmatpush.msra.mxu0 0.0
  %900 = vmatpush.msra.mxu0 %v304
  %901 = vmatpush.msra.mxu0 %v302
  %902 = vmatpush.msra.mxu0 %v300
  %903 = vmatpush.msra.mxu0 %v298
  %904 = vmatpush.msra.mxu0 %v296
  %905 = vmatpush.msra.mxu0 %v294
  %906 = vmatpush.msra.mxu0 %v292
  %907 = vmatpush.msra.mxu0 %v290
  %908 = vmatmul.f32.gmra.mxu0 %v890
  %v909 = vpop.f32.mrf.mxu0
  %v910 = vadd.f32 0.0, %v909
  %911 = vdwg.mxu0
  %912 = vmatpush.msra.mxu0 0.0
  %913 = vmatpush.msra.mxu0 0.0
  %914 = vmatpush.msra.mxu0 0.0
  %915 = vmatpush.msra.mxu0 0.0
  %916 = vmatpush.msra.mxu0 0.0
  %917 = vmatpush.msra.mxu0 0.0
  %918 = vmatpush.msra.mxu0 0.0
  %919 = vmatpush.msra.mxu0 0.0
  %920 = vmatpush.msra.mxu0 %v305
  %921 = vmatpush.msra.mxu0 %v303
  %922 = vmatpush.msra.mxu0 %v301
  %923 = vmatpush.msra.mxu0 %v299
  %924 = vmatpush.msra.mxu0 %v297
  %925 = vmatpush.msra.mxu0 %v295
  %926 = vmatpush.msra.mxu0 %v293
  %927 = vmatpush.msra.mxu0 %v291
  %928 = vmatmul.f32.gmra.mxu0 %v890
  %v929 = vpop.f32.mrf.mxu0
  %v930 = vadd.f32 0.0, %v929
  %931 = vdwg.mxu0
  %v932 = vadd.f32 %v286, %v910
  %v933 = vadd.f32 %v287, %v930
  %v934 = vxor.u32 %v932, 2147483648
  %v935 = vxor.u32 %v933, 2147483648
  %v936 = vmul.f32 %v934, 1.442695
  %v937 = vpow.pop %v936
  %v938 = vmul.f32 %v935, 1.442695
  %v939 = vpow.pop %v938
  %v940 = vadd.f32 %v937, 1.0
  %v941 = vadd.f32 %v939, 1.0
  %v942 = vrcp.pop %v940
  %v943 = vmul.f32 %v940, %v942
  %v944 = vsub.f32 1.0, %v943
  %v945 = vmul.f32 %v942, %v944
  %v946 = vadd.f32 %v942, %v945
  %vm947 = vweird.f32 %v940
  %vm948 = vweird.f32 %v942
  %vm949 = vmor %vm947, %vm948
  %v950 = vsel %vm949, %v942, %v946
  %v951 = vand.u32 2147483647, %v940
  %vm952 = vcmp.eq.f32.partialorder %v951, 8.507059e+37
  %v953 = vand.u32 %v940, 2147483648
  %v954 = vor.u32 1.1754944e-38, %v953
  %v955 = vsel %vm952, %v954, %v950
  %v956 = vmul.f32 1.0, %v955
  %v957 = vrcp.pop %v941
  %v958 = vmul.f32 %v941, %v957
  %v959 = vsub.f32 1.0, %v958
  %v960 = vmul.f32 %v957, %v959
  %v961 = vadd.f32 %v957, %v960
  %vm962 = vweird.f32 %v941
  %vm963 = vweird.f32 %v957
  %vm964 = vmor %vm962, %vm963
  %v965 = vsel %vm964, %v957, %v961
  %v966 = vand.u32 2147483647, %v941
  %vm967 = vcmp.eq.f32.partialorder %v966, 8.507059e+37
  %v968 = vand.u32 %v941, 2147483648
  %v969 = vor.u32 1.1754944e-38, %v968
  %v970 = vsel %vm967, %v969, %v965
  %v971 = vmul.f32 1.0, %v970
  %v972 = vtanh.pop %v933
  %v973 = vmul.f32 %v956, %v882
  %v974 = vmul.f32 %v956, %v972
  %976 = vrot.lane.b32.xlu0 %v974, 64
  %v977 = vpop.permute.xlu0 %976
  %v979 = vadd.f32 %v973, %v977
  %v980 = vtanh.pop %v979
  %v981 = vmul.f32 %v971, %v980
  %983 = vrot.lane.b32.xlu0 %v981, 64
  %v984 = vpop.permute.xlu0 %983
  %986 = vst.msk [vmem:[%s8 + $0x30] sm:$0xff] %vm306, %v984
  %v987 = vsel %vm306, %v984, 0
  %989 = vmatpush.msra.mxu0 0.0
  %990 = vmatpush.msra.mxu0 0.0
  %991 = vmatpush.msra.mxu0 0.0
  %992 = vmatpush.msra.mxu0 0.0
  %993 = vmatpush.msra.mxu0 0.0
  %994 = vmatpush.msra.mxu0 0.0
  %995 = vmatpush.msra.mxu0 0.0
  %996 = vmatpush.msra.mxu0 0.0
  %997 = vmatpush.msra.mxu0 %v304
  %998 = vmatpush.msra.mxu0 %v302
  %999 = vmatpush.msra.mxu0 %v300
  %1000 = vmatpush.msra.mxu0 %v298
  %1001 = vmatpush.msra.mxu0 %v296
  %1002 = vmatpush.msra.mxu0 %v294
  %1003 = vmatpush.msra.mxu0 %v292
  %1004 = vmatpush.msra.mxu0 %v290
  %1005 = vmatmul.f32.gmra.mxu0 %v987
  %v1006 = vpop.f32.mrf.mxu0
  %v1007 = vadd.f32 0.0, %v1006
  %1008 = vdwg.mxu0
  %1009 = vmatpush.msra.mxu0 0.0
  %1010 = vmatpush.msra.mxu0 0.0
  %1011 = vmatpush.msra.mxu0 0.0
  %1012 = vmatpush.msra.mxu0 0.0
  %1013 = vmatpush.msra.mxu0 0.0
  %1014 = vmatpush.msra.mxu0 0.0
  %1015 = vmatpush.msra.mxu0 0.0
  %1016 = vmatpush.msra.mxu0 0.0
  %1017 = vmatpush.msra.mxu0 %v305
  %1018 = vmatpush.msra.mxu0 %v303
  %1019 = vmatpush.msra.mxu0 %v301
  %1020 = vmatpush.msra.mxu0 %v299
  %1021 = vmatpush.msra.mxu0 %v297
  %1022 = vmatpush.msra.mxu0 %v295
  %1023 = vmatpush.msra.mxu0 %v293
  %1024 = vmatpush.msra.mxu0 %v291
  %1025 = vmatmul.f32.gmra.mxu0 %v987
  %v1026 = vpop.f32.mrf.mxu0
  %v1027 = vadd.f32 0.0, %v1026
  %1028 = vdwg.mxu0
  %v1029 = vadd.f32 %v288, %v1007
  %v1030 = vadd.f32 %v289, %v1027
  %v1031 = vxor.u32 %v1029, 2147483648
  %v1032 = vxor.u32 %v1030, 2147483648
  %v1033 = vmul.f32 %v1031, 1.442695
  %v1034 = vpow.pop %v1033
  %v1035 = vmul.f32 %v1032, 1.442695
  %v1036 = vpow.pop %v1035
  %v1037 = vadd.f32 %v1034, 1.0
  %v1038 = vadd.f32 %v1036, 1.0
  %v1039 = vrcp.pop %v1037
  %v1040 = vmul.f32 %v1037, %v1039
  %v1041 = vsub.f32 1.0, %v1040
  %v1042 = vmul.f32 %v1039, %v1041
  %v1043 = vadd.f32 %v1039, %v1042
  %vm1044 = vweird.f32 %v1037
  %vm1045 = vweird.f32 %v1039
  %vm1046 = vmor %vm1044, %vm1045
  %v1047 = vsel %vm1046, %v1039, %v1043
  %v1048 = vand.u32 2147483647, %v1037
  %vm1049 = vcmp.eq.f32.partialorder %v1048, 8.507059e+37
  %v1050 = vand.u32 %v1037, 2147483648
  %v1051 = vor.u32 1.1754944e-38, %v1050
  %v1052 = vsel %vm1049, %v1051, %v1047
  %v1053 = vmul.f32 1.0, %v1052
  %v1054 = vrcp.pop %v1038
  %v1055 = vmul.f32 %v1038, %v1054
  %v1056 = vsub.f32 1.0, %v1055
  %v1057 = vmul.f32 %v1054, %v1056
  %v1058 = vadd.f32 %v1054, %v1057
  %vm1059 = vweird.f32 %v1038
  %vm1060 = vweird.f32 %v1054
  %vm1061 = vmor %vm1059, %vm1060
  %v1062 = vsel %vm1061, %v1054, %v1058
  %v1063 = vand.u32 2147483647, %v1038
  %vm1064 = vcmp.eq.f32.partialorder %v1063, 8.507059e+37
  %v1065 = vand.u32 %v1038, 2147483648
  %v1066 = vor.u32 1.1754944e-38, %v1065
  %v1067 = vsel %vm1064, %v1066, %v1062
  %v1068 = vmul.f32 1.0, %v1067
  %v1069 = vtanh.pop %v1030
  %v1070 = vmul.f32 %v1053, %v979
  %v1071 = vmul.f32 %v1053, %v1069
  %1073 = vrot.lane.b32.xlu0 %v1071, 64
  %v1074 = vpop.permute.xlu0 %1073
  %v1076 = vadd.f32 %v1070, %v1074
  %v1077 = vtanh.pop %v1076
  %v1078 = vmul.f32 %v1068, %v1077
  %1080 = vrot.lane.b32.xlu0 %v1078, 64
  %v1081 = vpop.permute.xlu0 %1080
  %1083 = vst.msk [vmem:[%s8 + $0x38] sm:$0xff] %vm306, %v1081
  %v1084 = vld [vmem:[%s8] sm:$0xff]
  %v1085 = vld [vmem:[%s8 + $0x8] sm:$0xff]
  %v1086 = vld [vmem:[%s8 + $0x10] sm:$0xff]
  %v1087 = vld [vmem:[%s8 + $0x18] sm:$0xff]
  %v1088 = vld [vmem:[%s8 + $0x20] sm:$0xff]
  %v1089 = vld [vmem:[%s8 + $0x28] sm:$0xff]
  %v1090 = vld [vmem:[%s8 + $0x30] sm:$0xff]
  %v1091 = vld [vmem:[%s8 + $0x38] sm:$0xff]
  %v1092 = vld [vmem:[%s6] sm:$0xff]
  %v1093 = vld [vmem:[%s6 + $0x8] sm:$0xff]
  %v1094 = vld [vmem:[%s6 + $0x10] sm:$0xff]
  %v1095 = vld [vmem:[%s6 + $0x18] sm:$0xff]
  %v1096 = vld [vmem:[%s6 + $0x20] sm:$0xff]
  %v1097 = vld [vmem:[%s6 + $0x28] sm:$0xff]
  %v1098 = vld [vmem:[%s6 + $0x30] sm:$0xff]
  %v1099 = vld [vmem:[%s6 + $0x38] sm:$0xff]
  %v1100 = vld [vmem:[%s7] sm:$0x1]
  %v1102 = vperm.slane %v1100, 0
  %v1105 = vsel %vm306, %v1084, 0
  %v1108 = vsel %vm306, %v1085, 0
  %v1111 = vsel %vm306, %v1086, 0
  %v1114 = vsel %vm306, %v1087, 0
  %v1117 = vsel %vm306, %v1088, 0
  %v1120 = vsel %vm306, %v1089, 0
  %v1123 = vsel %vm306, %v1090, 0
  %v1126 = vsel %vm306, %v1091, 0
  %1128 = vmatpush.msra.mxu0 0.0
  %1129 = vmatpush.msra.mxu0 0.0
  %1130 = vmatpush.msra.mxu0 0.0
  %1131 = vmatpush.msra.mxu0 0.0
  %1132 = vmatpush.msra.mxu0 0.0
  %1133 = vmatpush.msra.mxu0 0.0
  %1134 = vmatpush.msra.mxu0 0.0
  %1135 = vmatpush.msra.mxu0 0.0
  %1136 = vmatpush.msra.mxu0 %v1099
  %1137 = vmatpush.msra.mxu0 %v1098
  %1138 = vmatpush.msra.mxu0 %v1097
  %1139 = vmatpush.msra.mxu0 %v1096
  %1140 = vmatpush.msra.mxu0 %v1095
  %1141 = vmatpush.msra.mxu0 %v1094
  %1142 = vmatpush.msra.mxu0 %v1093
  %1143 = vmatpush.msra.mxu0 %v1092
  %1144 = vmatmul.f32.gmra.mxu0 %v1105
  %v1145 = vpop.f32.mrf.mxu0
  %v1146 = vadd.f32 %v1102, %v1145
  %1147 = vmatmul.f32.gmra.mxu0 %v1108
  %v1148 = vpop.f32.mrf.mxu0
  %v1149 = vadd.f32 %v1102, %v1148
  %1150 = vmatmul.f32.gmra.mxu0 %v1111
  %v1151 = vpop.f32.mrf.mxu0
  %v1152 = vadd.f32 %v1102, %v1151
  %1153 = vmatmul.f32.gmra.mxu0 %v1114
  %v1154 = vpop.f32.mrf.mxu0
  %v1155 = vadd.f32 %v1102, %v1154
  %1156 = vmatmul.f32.gmra.mxu0 %v1117
  %v1157 = vpop.f32.mrf.mxu0
  %v1158 = vadd.f32 %v1102, %v1157
  %1159 = vmatmul.f32.gmra.mxu0 %v1120
  %v1160 = vpop.f32.mrf.mxu0
  %v1161 = vadd.f32 %v1102, %v1160
  %1162 = vmatmul.f32.gmra.mxu0 %v1123
  %v1163 = vpop.f32.mrf.mxu0
  %v1164 = vadd.f32 %v1102, %v1163
  %1165 = vmatmul.f32.gmra.mxu0 %v1126
  %v1166 = vpop.f32.mrf.mxu0
  %v1167 = vadd.f32 %v1102, %v1166
  %1168 = vdwg.mxu0
  %1169 = vst [vmem:[%s9] sm:$0xff] %v1146
  %1170 = vst [vmem:[%s9 + $0x8] sm:$0xff] %v1149
  %1171 = vst [vmem:[%s9 + $0x10] sm:$0xff] %v1152
  %1172 = vst [vmem:[%s9 + $0x18] sm:$0xff] %v1155
  %1173 = vst [vmem:[%s9 + $0x20] sm:$0xff] %v1158
  %1174 = vst [vmem:[%s9 + $0x28] sm:$0xff] %v1161
  %1175 = vst [vmem:[%s9 + $0x30] sm:$0xff] %v1164
  %1176 = vst [vmem:[%s9 + $0x38] sm:$0xff] %v1167
  // Predicated region
  $region34: #{music_rnn_forward.1} parent=0 // pred_check
    _
  $region35: #{music_rnn_forward.1} parent=0 // pred_check_branch
    %1178 = sbr.rel (0) target = $region37
  $region36: #{music_rnn_forward.1} parent=0 // pred_region
    _
  $region37: #{music_rnn_forward.1} parent=0 // pred_fallthru
    _
  // Predicated region
  $region38: #{music_rnn_forward.1} parent=0 // pred_check
    _
  $region39: #{music_rnn_forward.1} parent=0 // pred_check_branch
    %1180 = sbr.rel (0) target = $region41
  $region40: #{music_rnn_forward.1} parent=0 // pred_region
    _
  $region41: #{music_rnn_forward.1} parent=0 // pred_fallthru
    _
  // Predicated region
  $region42: #{music_rnn_forward.1} parent=0 // pred_check
    _
  $region43: #{music_rnn_forward.1} parent=0 // pred_check_branch
    %1182 = sbr.rel (0) target = $region45
  $region44: #{music_rnn_forward.1} parent=0 // pred_region
    _
  $region45: #{music_rnn_forward.1} parent=0 // pred_fallthru
    _
  // Predicated region
  $region46: #{music_rnn_forward.1} parent=0 // pred_check
    _
  $region47: #{music_rnn_forward.1} parent=0 // pred_check_branch
    %1184 = sbr.rel (0) target = $region49
  $region48: #{music_rnn_forward.1} parent=0 // pred_region
    _
  $region49: #{music_rnn_forward.1} parent=0 // pred_fallthru
    _

</llo_original>
